<compile_context>
chip_gen: v5e
topology: v5e:2x2
jax: 0.10.0
libtpu: 0.0.40
codegen_flags: <defaults>
</compile_context>

<pallas_src>
import jax
import jax.numpy as jnp
from jax import lax
from jax.experimental import pallas as pl
from jax.experimental.pallas import tpu as pltpu


# --------------------------------------------------------------------------- #
# Host-side constant folding / constant construction
# --------------------------------------------------------------------------- #
def _fuse_bn_into_conv(w_oihw, conv_bias, gamma, beta, mean, var, eps=1e-5):
    """Fold eval-mode BatchNorm into the conv weight/bias (pure host-side folding)."""
    scale = gamma / jnp.sqrt(var + eps)                        # (O,)
    w = w_oihw * scale[:, None, None, None]
    b = beta + (conv_bias - mean) * scale
    return w, b


def _flatten_weight(w_oihw):
    """OIHW -> (O, KH*KW*I) matching the in-kernel (kh, kw, ci) tap ordering; bf16 for the MXU."""
    o = w_oihw.shape[0]
    return jnp.transpose(w_oihw, (0, 2, 3, 1)).reshape(o, -1).astype(jnp.bfloat16)


def _pool_matrices(bs, H, W):
    """Exact 0/1 selection matrices (f32) for pool-downsample (S) and nearest-2x upsample (U)
    on the flattened lane layout  n = b*H*W + y*W + x."""
    Hp, Wp = H // 2, W // 2
    N, Np = bs * H * W, bs * Hp * Wp
    n = jnp.arange(N)
    p = jnp.arange(Np)
    bn, rn = n // (H * W), n % (H * W)
    yn, xn = rn // W, rn % W
    bp, rp = p // (Hp * Wp), p % (Hp * Wp)
    yp, xp = rp // Wp, rp % Wp
    # S[n, p] = 1 iff n is the top-left corner of pooled position p.
    S = ((bn[:, None] == bp[None, :])
         & (yn[:, None] == 2 * yp[None, :])
         & (xn[:, None] == 2 * xp[None, :])).astype(jnp.float32)          # (N, Np)
    # U[p, n] = 1 iff full-res position n is sourced (nearest) from pooled position p.
    U = ((bp[:, None] == bn[None, :])
         & (yp[:, None] == yn[None, :] // 2)
         & (xp[:, None] == xn[None, :] // 2)).astype(jnp.float32)          # (Np, N)
    return S, U


def _tap_masks(bs, H, W, k):
    """(k*k, bs*H*W) f32 boundary masks, one row per conv tap, on the flat lane layout."""
    pad = k // 2
    n = jnp.arange(bs * H * W)
    y = (n % (H * W)) // W
    x = n % W
    rows = []
    for kh in range(k):
        for kw in range(k):
            dy, dx = kh - pad, kw - pad
            rows.append((y + dy >= 0) & (y + dy < H) & (x + dx >= 0) & (x + dx < W))
    return jnp.stack(rows).astype(jnp.float32)


# --------------------------------------------------------------------------- #
# In-kernel conv: roll-based im2col into a shared VMEM scratch + one bf16 matmul
# --------------------------------------------------------------------------- #
def _conv(x, w_bf16, bias, masks, W, k, patches_ref):
    """Same-padding conv on a lane-dense (Cin, N) activation.

    x         : (Cin, N) f32, flat layout n = b*H*W + y*W + x
    w_bf16    : (Cout, k*k*Cin) bf16  (BN scale already folded in)
    bias      : (Cout, 1) f32         (conv bias + BN shift)
    masks     : (k*k, N) f32 boundary masks (host constants)
    patches_ref: persistent VMEM scratch (>= k*k*Cin sublanes, >= N lanes)
    """
    cin, n = x.shape
    pad = k // 2
    for kh in range(k):
        for kw in range(k):
            t = kh * k + kw
            dy, dx = kh - pad, kw - pad
            off = t * cin
            if dy == 0 and dx == 0:
                tap = x
            else:
                s = dy * W + dx
                # value at flat position n+s, boundary-masked to zero (handles padding,
                # row wrap and batch-block wrap in one multiply).
                tap = pltpu.roll(x, (-s) % n, axis=1) * masks[t:t + 1, :]
            patches_ref[off:off + cin, 0:n] = tap
    patches = patches_ref[0:k * k * cin, 0:n].astype(jnp.bfloat16)
    y = jnp.dot(w_bf16, patches, preferred_element_type=jnp.float32)      # (Cout, N) f32
    return y + bias


def _make_kernel(c_in, c1, c2, W, k):
    kk = k * k
    o0, o1, o2, o3, o4 = 0, c1, c1 + c2, c1 + c2 + c1, c1 + c2 + c1 + c_in

    def kernel(x_ref, w_up_ref, w_enc_ref, w_d1_ref, w_d2_ref,
               bias_ref, s_ref, u_ref, masks_ref, o_ref, patches_ref):
        x = x_ref[...]                                   # (c_in, N) f32, lane-dense
        n = x.shape[1]
        b_all = bias_ref[...]                            # (o4, 1) f32
        b_up, b_enc = b_all[o0:o1], b_all[o1:o2]
        b_d1, b_d2 = b_all[o2:o3], b_all[o3:o4]
        mf = masks_ref[0:kk, :]                          # full-res tap masks (kk, N)

        # upstream_layers: Conv2d(c_in -> c1, 3x3, pad=1)
        a1 = _conv(x, w_up_ref[...], b_up, mf, W, k, patches_ref)

        # encoder 'B': Dropout(id) -> MaxPool2d(2,2) -> Conv -> BN(folded) -> LeakyReLU(True)=id -> Dropout(id)
        # windowed 2x2 max via lane rolls (XLU), then exact 0/1 selection matmul to downsample.
        m = jnp.maximum(jnp.maximum(a1, pltpu.roll(a1, n - 1, axis=1)),
                        jnp.maximum(pltpu.roll(a1, n - W, axis=1),
                                    pltpu.roll(a1, n - W - 1, axis=1)))
        pooled = jnp.dot(m, s_ref[...], preferred_element_type=jnp.float32)   # (c1, N/4) f32
        n_pool = pooled.shape[1]
        mp = masks_ref[kk:2 * kk, 0:n_pool]              # pooled-res tap masks (kk, N/4)
        e = _conv(pooled, w_enc_ref[...], b_enc, mp, W // 2, k, patches_ref)  # (c2, N/4)

        # decoder 'B': Interpolate(2x nearest) -> Conv -> BN -> id -> Dropout(id) -> Conv -> BN -> Sigmoid
        u = jnp.dot(e, u_ref[...], preferred_element_type=jnp.float32)        # (c2, N) f32
        d1 = _conv(u, w_d1_ref[...], b_d1, mf, W, k, patches_ref)             # (c1, N)
        d2 = _conv(d1, w_d2_ref[...], b_d2, mf, W, k, patches_ref)            # (c_in, N)
        o_ref[...] = jax.nn.sigmoid(d2).astype(o_ref.dtype)

    return kernel


# --------------------------------------------------------------------------- #
# Host-side wrapper
# --------------------------------------------------------------------------- #
def sidecar_autoencoder_forward(x_nchw, params, num_steps=1):
    """Fused eval-mode forward pass. NCHW in / NCHW out, like the PyTorch module.

    num_steps=1 on v5e/v6e (single TensorCore); set num_steps=2 on v7x so the two batch
    halves shard across its two TensorCores ("parallel" grid axis).
    """
    B, c_in, H, W = x_nchw.shape
    c1 = params["up_w"].shape[0]            # num_channels
    c2 = params["enc_w"].shape[0]           # num_channels * channel_mult
    k = params["enc_w"].shape[-1]
    assert params["up_w"].shape[-1] == k, "upstream conv kernel must match kernel_size"
    assert B % num_steps == 0
    bs = B // num_steps
    N = bs * H * W                          # lanes per grid step (batch packed into N)
    Np = bs * (H // 2) * (W // 2)
    kk = k * k

    # ---- host-side constant folding: BN scale -> weights, all biases -> one packed vector
    w_up = _flatten_weight(params["up_w"])
    b_up = params["up_b"].astype(jnp.float32)
    w_enc4, b_enc = _fuse_bn_into_conv(params["enc_w"], params["enc_b"], *params["enc_bn"])
    w_d14, b_d1 = _fuse_bn_into_conv(params["dec1_w"], params["dec1_b"], *params["dec1_bn"])
    w_d24, b_d2 = _fuse_bn_into_conv(params["dec2_w"], params["dec2_b"], *params["dec2_bn"])
    w_enc, w_d1, w_d2 = map(_flatten_weight, (w_enc4, w_d14, w_d24))
    bias_all = jnp.concatenate([b_up, b_enc, b_d1, b_d2]).astype(jnp.float32)[:, None]

    S, U = _pool_matrices(bs, H, W)                     # (N, Np), (Np, N) f32 constants
    masks = jnp.zeros((2 * kk, N), jnp.float32)
    masks = masks.at[:kk, :].set(_tap_masks(bs, H, W, k))
    masks = masks.at[kk:, :Np].set(_tap_masks(bs, H // 2, W // 2, k))

    # lane-dense input slab: (C, B*H*W), flat index n = b*H*W + y*W + x
    x_lane = jnp.transpose(x_nchw, (1, 0, 2, 3)).reshape(c_in, B * H * W).astype(jnp.float32)

    kernel = _make_kernel(c_in, c1, c2, W, k)
    kkc_max = kk * max(c_in, c1, c2)                    # largest im2col slab (sublanes)

    def whole(arr):                                     # small constant operand, whole array
        return pl.BlockSpec(arr.shape, lambda g: (0, 0))

    out = pl.pallas_call(
        kernel,
        out_shape=jax.ShapeDtypeStruct((c_in, B * H * W), jnp.float32),
        grid=(num_steps,),
        in_specs=[
            pl.BlockSpec((c_in, N), lambda g: (0, g)),  # batch chunk along the lane axis
            whole(w_up), whole(w_enc), whole(w_d1), whole(w_d2),
            whole(bias_all), whole(S), whole(U), whole(masks),
        ],
        out_specs=pl.BlockSpec((c_in, N), lambda g: (0, g)),
        scratch_shapes=[pltpu.VMEM((kkc_max, N), jnp.float32)],  # shared im2col slab
        compiler_params=pltpu.CompilerParams(
            dimension_semantics=("parallel",),  # batch chunks shard across TCs on v7x
            # NOTE: at larger img_size/channels set vmem_limit_bytes explicitly (v7x has
            # 64 MiB VMEM) or tile the lane axis; at 16x16 everything is < 1 MiB.
        ),
    )(x_lane, w_up, w_enc, w_d1, w_d2, bias_all, S, U, masks)

    return jnp.transpose(out.reshape(c_in, B, H, W), (1, 0, 2, 3))


# --------------------------------------------------------------------------- #
# Parameters (deterministic, synthetic — mirrors the shapes from __init__)
# --------------------------------------------------------------------------- #
def _conv_init(key, cout, cin, k):
    kw, kb = jax.random.split(key)
    w = jax.random.normal(kw, (cout, cin, k, k), jnp.float32) * 0.1
    b = jax.random.normal(kb, (cout,), jnp.float32) * 0.1
    return w, b


def _bn_init(key, c):
    k1, k2, k3, k4 = jax.random.split(key, 4)
    gamma = jax.random.uniform(k1, (c,), jnp.float32, 0.5, 1.5)
    beta = jax.random.normal(k2, (c,), jnp.float32) * 0.1
    mean = jax.random.normal(k3, (c,), jnp.float32) * 0.1
    var = jax.random.uniform(k4, (c,), jnp.float32, 0.5, 1.5)
    return gamma, beta, mean, var


def init_params(key, in_channels, num_channels, k):
    channel_mult = 2
    keys = jax.random.split(key, 8)
    p = {}
    # upstream_layers: synthetic main-network slice, Conv2d(in_c -> num_c, k=3, pad=1)
    p["up_w"], p["up_b"] = _conv_init(keys[0], num_channels, in_channels, 3)
    # encoder 'B': Conv2d(num_c -> num_c * 2) + BN
    p["enc_w"], p["enc_b"] = _conv_init(keys[1], num_channels * channel_mult, num_channels, k)
    p["enc_bn"] = _bn_init(keys[2], num_channels * channel_mult)
    # decoder 'B': Conv2d(num_c * 2 -> num_c) + BN,  Conv2d(num_c -> in_c) + BN
    p["dec1_w"], p["dec1_b"] = _conv_init(keys[3], num_channels, num_channels * channel_mult, k)
    p["dec1_bn"] = _bn_init(keys[4], num_channels)
    p["dec2_w"], p["dec2_b"] = _conv_init(keys[5], in_channels, num_channels, k)
    p["dec2_bn"] = _bn_init(keys[6], in_channels)
    return p


# --------------------------------------------------------------------------- #
# Pure-JAX reference (for correctness validation only; all f32)
# --------------------------------------------------------------------------- #
def _reference_forward(x_nchw, params, eps=1e-5):
    def conv(x, w, b):
        p = w.shape[-1] // 2
        y = lax.conv_general_dilated(
            x, w, window_strides=(1, 1), padding=((p, p), (p, p)),
            dimension_numbers=("NCHW", "OIHW", "NCHW"))
        return y + b[None, :, None, None]

    def bn(x, gamma, beta, mean, var):
        inv = gamma / jnp.sqrt(var + eps)
        return (x - mean[None, :, None, None]) * inv[None, :, None, None] \
            + beta[None, :, None, None]

    x = conv(x_nchw, params["up_w"], params["up_b"])
    # encoder 'B'
    x = lax.reduce_window(x, -jnp.inf, lax.max, (1, 1, 2, 2), (1, 1, 2, 2), "VALID")
    x = conv(x, params["enc_w"], params["enc_b"])
    x = bn(x, *params["enc_bn"])          # LeakyReLU(True) == identity
    # decoder 'B'
    x = jnp.repeat(jnp.repeat(x, 2, axis=2), 2, axis=3)
    x = conv(x, params["dec1_w"], params["dec1_b"])
    x = bn(x, *params["dec1_bn"])         # LeakyReLU(True) == identity
    x = conv(x, params["dec2_w"], params["dec2_b"])
    x = bn(x, *params["dec2_bn"])
    return jax.nn.sigmoid(x)


if __name__ == "__main__":
    B = 2
    in_channels = 3          # channels[0]
    num_channels = 4         # channels[-1]
    img_size = 16
    kernel_size = 3
    # encoder_type = 'B'

    key = jax.random.PRNGKey(0)
    kx, kp = jax.random.split(key)
    x = jax.random.normal(kx, (B, in_channels, img_size, img_size), jnp.float32)
    params = init_params(kp, in_channels, num_channels, kernel_size)

    fwd = jax.jit(lambda inp: sidecar_autoencoder_forward(inp, params))
    out = jax.block_until_ready(fwd(x))

    assert out.shape == (B, in_channels, img_size, img_size), out.shape
    assert bool(jnp.all((out >= 0.0) & (out <= 1.0))), "sigmoid output out of range"

    ref = _reference_forward(x, params)
    max_err = float(jnp.max(jnp.abs(out - ref)))
    # Matmul operands are bf16 (per perf review); f32 reference agrees to ~1e-3 here.
    assert max_err < 1e-2, f"max |pallas - reference| = {max_err}"

    print("KERNEL_OK")
</pallas_src>

<mosaic_0001>
module attributes {stable_mosaic.version = 11 : i64} {
  func.func @kernel(%arg0: i32, %arg1: memref<3x512xf32, #tpu.memory_space<vmem>>, %arg2: memref<4x27xbf16, #tpu.memory_space<vmem>>, %arg3: memref<8x36xbf16, #tpu.memory_space<vmem>>, %arg4: memref<4x72xbf16, #tpu.memory_space<vmem>>, %arg5: memref<3x36xbf16, #tpu.memory_space<vmem>>, %arg6: memref<19x1xf32, #tpu.memory_space<vmem>>, %arg7: memref<512x128xf32, #tpu.memory_space<vmem>>, %arg8: memref<128x512xf32, #tpu.memory_space<vmem>>, %arg9: memref<18x512xf32, #tpu.memory_space<vmem>>, %arg10: memref<3x512xf32, #tpu.memory_space<vmem>>, %arg11: memref<72x512xf32, #tpu.memory_space<vmem>>) attributes {dimension_semantics = [#tpu.dimension_semantics<parallel>], iteration_bounds = array<i64: 1>, scalar_prefetch = 0 : i64, scratch_operands = 1 : i64, tpu.core_type = #tpu.core_type<tc>, window_params = [{transform_indices = @transform_0, window_bounds = array<i64: 3, 512>}, {pipeline_mode = #tpu.pipeline_mode<synchronous>, transform_indices = @transform_1, window_bounds = array<i64: 4, 27>}, {pipeline_mode = #tpu.pipeline_mode<synchronous>, transform_indices = @transform_2, window_bounds = array<i64: 8, 36>}, {pipeline_mode = #tpu.pipeline_mode<synchronous>, transform_indices = @transform_3, window_bounds = array<i64: 4, 72>}, {pipeline_mode = #tpu.pipeline_mode<synchronous>, transform_indices = @transform_4, window_bounds = array<i64: 3, 36>}, {pipeline_mode = #tpu.pipeline_mode<synchronous>, transform_indices = @transform_5, window_bounds = array<i64: 19, 1>}, {pipeline_mode = #tpu.pipeline_mode<synchronous>, transform_indices = @transform_6, window_bounds = array<i64: 512, 128>}, {pipeline_mode = #tpu.pipeline_mode<synchronous>, transform_indices = @transform_7, window_bounds = array<i64: 128, 512>}, {pipeline_mode = #tpu.pipeline_mode<synchronous>, transform_indices = @transform_8, window_bounds = array<i64: 18, 512>}, {transform_indices = @transform_9, window_bounds = array<i64: 3, 512>}]} {
    %c0 = arith.constant 0 : index
    %c0_0 = arith.constant 0 : index
    %0 = vector.load %arg1[%c0, %c0_0] : memref<3x512xf32, #tpu.memory_space<vmem>>, vector<3x512xf32>
    %c0_1 = arith.constant 0 : index
    %c0_2 = arith.constant 0 : index
    %1 = vector.load %arg6[%c0_1, %c0_2] : memref<19x1xf32, #tpu.memory_space<vmem>>, vector<19x1xf32>
    %2 = vector.extract_strided_slice %1 {offsets = [0, 0], sizes = [4, 1], strides = [1, 1]} : vector<19x1xf32> to vector<4x1xf32>
    %3 = vector.extract_strided_slice %1 {offsets = [4, 0], sizes = [8, 1], strides = [1, 1]} : vector<19x1xf32> to vector<8x1xf32>
    %4 = vector.extract_strided_slice %1 {offsets = [12, 0], sizes = [4, 1], strides = [1, 1]} : vector<19x1xf32> to vector<4x1xf32>
    %5 = vector.extract_strided_slice %1 {offsets = [16, 0], sizes = [3, 1], strides = [1, 1]} : vector<19x1xf32> to vector<3x1xf32>
    %c0_3 = arith.constant 0 : index
    %c0_4 = arith.constant 0 : index
    %6 = vector.load %arg9[%c0_3, %c0_4] : memref<18x512xf32, #tpu.memory_space<vmem>>, vector<9x512xf32>
    %c0_5 = arith.constant 0 : index
    %c0_6 = arith.constant 0 : index
    %7 = vector.load %arg2[%c0_5, %c0_6] : memref<4x27xbf16, #tpu.memory_space<vmem>>, vector<4x27xbf16>
    %c17_i32 = arith.constant 17 : i32
    %8 = tpu.dynamic_rotate %0 by %c17_i32 dim 1 : vector<3x512xf32>, i32 -> vector<3x512xf32>
    %9 = vector.extract_strided_slice %6 {offsets = [0, 0], sizes = [1, 512], strides = [1, 1]} : vector<9x512xf32> to vector<1x512xf32>
    %10 = vector.broadcast %9 : vector<1x512xf32> to vector<3x512xf32>
    %11 = arith.mulf %8, %10 : vector<3x512xf32>
    %c0_7 = arith.constant 0 : index
    %c0_8 = arith.constant 0 : index
    %12 = vector.load %arg11[%c0_7, %c0_8] : memref<72x512xf32, #tpu.memory_space<vmem>>, vector<3x512xf32>
    tpu.vector_store %arg11[%c0_7, %c0_8], %11 {strides = array<i32>} : memref<72x512xf32, #tpu.memory_space<vmem>>, vector<3x512xf32>,
    %c16_i32 = arith.constant 16 : i32
    %13 = tpu.dynamic_rotate %0 by %c16_i32 dim 1 : vector<3x512xf32>, i32 -> vector<3x512xf32>
    %14 = vector.extract_strided_slice %6 {offsets = [1, 0], sizes = [1, 512], strides = [1, 1]} : vector<9x512xf32> to vector<1x512xf32>
    %15 = vector.broadcast %14 : vector<1x512xf32> to vector<3x512xf32>
    %16 = arith.mulf %13, %15 : vector<3x512xf32>
    %c3 = arith.constant 3 : index
    %c0_9 = arith.constant 0 : index
    %17 = vector.load %arg11[%c3, %c0_9] : memref<72x512xf32, #tpu.memory_space<vmem>>, vector<3x512xf32>
    tpu.vector_store %arg11[%c3, %c0_9], %16 {strides = array<i32>} : memref<72x512xf32, #tpu.memory_space<vmem>>, vector<3x512xf32>,
    %c15_i32 = arith.constant 15 : i32
    %18 = tpu.dynamic_rotate %0 by %c15_i32 dim 1 : vector<3x512xf32>, i32 -> vector<3x512xf32>
    %19 = vector.extract_strided_slice %6 {offsets = [2, 0], sizes = [1, 512], strides = [1, 1]} : vector<9x512xf32> to vector<1x512xf32>
    %20 = vector.broadcast %19 : vector<1x512xf32> to vector<3x512xf32>
    %21 = arith.mulf %18, %20 : vector<3x512xf32>
    %c6 = arith.constant 6 : index
    %c0_10 = arith.constant 0 : index
    %22 = vector.load %arg11[%c6, %c0_10] : memref<72x512xf32, #tpu.memory_space<vmem>>, vector<3x512xf32>
    tpu.vector_store %arg11[%c6, %c0_10], %21 {strides = array<i32>} : memref<72x512xf32, #tpu.memory_space<vmem>>, vector<3x512xf32>,
    %c1_i32 = arith.constant 1 : i32
    %23 = tpu.dynamic_rotate %0 by %c1_i32 dim 1 : vector<3x512xf32>, i32 -> vector<3x512xf32>
    %24 = vector.extract_strided_slice %6 {offsets = [3, 0], sizes = [1, 512], strides = [1, 1]} : vector<9x512xf32> to vector<1x512xf32>
    %25 = vector.broadcast %24 : vector<1x512xf32> to vector<3x512xf32>
    %26 = arith.mulf %23, %25 : vector<3x512xf32>
    %c9 = arith.constant 9 : index
    %c0_11 = arith.constant 0 : index
    %27 = vector.load %arg11[%c9, %c0_11] : memref<72x512xf32, #tpu.memory_space<vmem>>, vector<3x512xf32>
    tpu.vector_store %arg11[%c9, %c0_11], %26 {strides = array<i32>} : memref<72x512xf32, #tpu.memory_space<vmem>>, vector<3x512xf32>,
    %c12 = arith.constant 12 : index
    %c0_12 = arith.constant 0 : index
    %28 = vector.load %arg11[%c12, %c0_12] : memref<72x512xf32, #tpu.memory_space<vmem>>, vector<3x512xf32>
    tpu.vector_store %arg11[%c12, %c0_12], %0 {strides = array<i32>} : memref<72x512xf32, #tpu.memory_space<vmem>>, vector<3x512xf32>,
    %c511_i32 = arith.constant 511 : i32
    %29 = tpu.dynamic_rotate %0 by %c511_i32 dim 1 : vector<3x512xf32>, i32 -> vector<3x512xf32>
    %30 = vector.extract_strided_slice %6 {offsets = [5, 0], sizes = [1, 512], strides = [1, 1]} : vector<9x512xf32> to vector<1x512xf32>
    %31 = vector.broadcast %30 : vector<1x512xf32> to vector<3x512xf32>
    %32 = arith.mulf %29, %31 : vector<3x512xf32>
    %c15 = arith.constant 15 : index
    %c0_13 = arith.constant 0 : index
    %33 = vector.load %arg11[%c15, %c0_13] : memref<72x512xf32, #tpu.memory_space<vmem>>, vector<3x512xf32>
    tpu.vector_store %arg11[%c15, %c0_13], %32 {strides = array<i32>} : memref<72x512xf32, #tpu.memory_space<vmem>>, vector<3x512xf32>,
    %c497_i32 = arith.constant 497 : i32
    %34 = tpu.dynamic_rotate %0 by %c497_i32 dim 1 : vector<3x512xf32>, i32 -> vector<3x512xf32>
    %35 = vector.extract_strided_slice %6 {offsets = [6, 0], sizes = [1, 512], strides = [1, 1]} : vector<9x512xf32> to vector<1x512xf32>
    %36 = vector.broadcast %35 : vector<1x512xf32> to vector<3x512xf32>
    %37 = arith.mulf %34, %36 : vector<3x512xf32>
    %c18 = arith.constant 18 : index
    %c0_14 = arith.constant 0 : index
    %38 = vector.load %arg11[%c18, %c0_14] : memref<72x512xf32, #tpu.memory_space<vmem>>, vector<3x512xf32>
    tpu.vector_store %arg11[%c18, %c0_14], %37 {strides = array<i32>} : memref<72x512xf32, #tpu.memory_space<vmem>>, vector<3x512xf32>,
    %c496_i32 = arith.constant 496 : i32
    %39 = tpu.dynamic_rotate %0 by %c496_i32 dim 1 : vector<3x512xf32>, i32 -> vector<3x512xf32>
    %40 = vector.extract_strided_slice %6 {offsets = [7, 0], sizes = [1, 512], strides = [1, 1]} : vector<9x512xf32> to vector<1x512xf32>
    %41 = vector.broadcast %40 : vector<1x512xf32> to vector<3x512xf32>
    %42 = arith.mulf %39, %41 : vector<3x512xf32>
    %c21 = arith.constant 21 : index
    %c0_15 = arith.constant 0 : index
    %43 = vector.load %arg11[%c21, %c0_15] : memref<72x512xf32, #tpu.memory_space<vmem>>, vector<3x512xf32>
    tpu.vector_store %arg11[%c21, %c0_15], %42 {strides = array<i32>} : memref<72x512xf32, #tpu.memory_space<vmem>>, vector<3x512xf32>,
    %c495_i32 = arith.constant 495 : i32
    %44 = tpu.dynamic_rotate %0 by %c495_i32 dim 1 : vector<3x512xf32>, i32 -> vector<3x512xf32>
    %45 = vector.extract_strided_slice %6 {offsets = [8, 0], sizes = [1, 512], strides = [1, 1]} : vector<9x512xf32> to vector<1x512xf32>
    %46 = vector.broadcast %45 : vector<1x512xf32> to vector<3x512xf32>
    %47 = arith.mulf %44, %46 : vector<3x512xf32>
    %c24 = arith.constant 24 : index
    %c0_16 = arith.constant 0 : index
    %48 = vector.load %arg11[%c24, %c0_16] : memref<72x512xf32, #tpu.memory_space<vmem>>, vector<3x512xf32>
    tpu.vector_store %arg11[%c24, %c0_16], %47 {strides = array<i32>} : memref<72x512xf32, #tpu.memory_space<vmem>>, vector<3x512xf32>,
    %c0_17 = arith.constant 0 : index
    %c0_18 = arith.constant 0 : index
    %49 = vector.load %arg11[%c0_17, %c0_18] : memref<72x512xf32, #tpu.memory_space<vmem>>, vector<27x512xf32>
    %50 = arith.truncf %49 : vector<27x512xf32> to vector<27x512xbf16>
    %cst = arith.constant dense<0.000000e+00> : vector<4x512xf32>
    %51 = tpu.matmul %7, %50, %cst {dimension_numbers = #tpu.dot_dimension_numbers<[1], [0], [0], [1], [0, 0, 1, 1], [], []>} : vector<4x27xbf16>, vector<27x512xbf16>, vector<4x512xf32> -> vector<4x512xf32>
    %52 = vector.broadcast %2 : vector<4x1xf32> to vector<4x512xf32>
    %53 = arith.addf %51, %52 : vector<4x512xf32>
    %c511_i32_19 = arith.constant 511 : i32
    %54 = tpu.dynamic_rotate %53 by %c511_i32_19 dim 1 : vector<4x512xf32>, i32 -> vector<4x512xf32>
    %55 = arith.maximumf %53, %54 : vector<4x512xf32>
    %c496_i32_20 = arith.constant 496 : i32
    %56 = tpu.dynamic_rotate %53 by %c496_i32_20 dim 1 : vector<4x512xf32>, i32 -> vector<4x512xf32>
    %c495_i32_21 = arith.constant 495 : i32
    %57 = tpu.dynamic_rotate %53 by %c495_i32_21 dim 1 : vector<4x512xf32>, i32 -> vector<4x512xf32>
    %58 = arith.maximumf %56, %57 : vector<4x512xf32>
    %59 = arith.maximumf %55, %58 : vector<4x512xf32>
    %c0_22 = arith.constant 0 : index
    %c0_23 = arith.constant 0 : index
    %60 = vector.load %arg7[%c0_22, %c0_23] : memref<512x128xf32, #tpu.memory_space<vmem>>, vector<512x128xf32>
    %cst_24 = arith.constant dense<0.000000e+00> : vector<4x128xf32>
    %61 = tpu.matmul %59, %60, %cst_24 {dimension_numbers = #tpu.dot_dimension_numbers<[1], [0], [0], [1], [0, 0, 1, 1], [], []>} : vector<4x512xf32>, vector<512x128xf32>, vector<4x128xf32> -> vector<4x128xf32>
    %c9_25 = arith.constant 9 : index
    %c0_26 = arith.constant 0 : index
    %62 = vector.load %arg9[%c9_25, %c0_26] : memref<18x512xf32, #tpu.memory_space<vmem>>, vector<9x128xf32>
    %c0_27 = arith.constant 0 : index
    %c0_28 = arith.constant 0 : index
    %63 = vector.load %arg3[%c0_27, %c0_28] : memref<8x36xbf16, #tpu.memory_space<vmem>>, vector<8x36xbf16>
    %c9_i32 = arith.constant 9 : i32
    %64 = tpu.dynamic_rotate %61 by %c9_i32 dim 1 : vector<4x128xf32>, i32 -> vector<4x128xf32>
    %65 = vector.extract_strided_slice %62 {offsets = [0, 0], sizes = [1, 128], strides = [1, 1]} : vector<9x128xf32> to vector<1x128xf32>
    %66 = vector.broadcast %65 : vector<1x128xf32> to vector<4x128xf32>
    %67 = arith.mulf %64, %66 : vector<4x128xf32>
    %c0_29 = arith.constant 0 : index
    %c0_30 = arith.constant 0 : index
    %68 = vector.load %arg11[%c0_29, %c0_30] : memref<72x512xf32, #tpu.memory_space<vmem>>, vector<4x128xf32>
    tpu.vector_store %arg11[%c0_29, %c0_30], %67 {strides = array<i32>} : memref<72x512xf32, #tpu.memory_space<vmem>>, vector<4x128xf32>,
    %c8_i32 = arith.constant 8 : i32
    %69 = tpu.dynamic_rotate %61 by %c8_i32 dim 1 : vector<4x128xf32>, i32 -> vector<4x128xf32>
    %70 = vector.extract_strided_slice %62 {offsets = [1, 0], sizes = [1, 128], strides = [1, 1]} : vector<9x128xf32> to vector<1x128xf32>
    %71 = vector.broadcast %70 : vector<1x128xf32> to vector<4x128xf32>
    %72 = arith.mulf %69, %71 : vector<4x128xf32>
    %c4 = arith.constant 4 : index
    %c0_31 = arith.constant 0 : index
    %73 = vector.load %arg11[%c4, %c0_31] : memref<72x512xf32, #tpu.memory_space<vmem>>, vector<4x128xf32>
    tpu.vector_store %arg11[%c4, %c0_31], %72 {strides = array<i32>} : memref<72x512xf32, #tpu.memory_space<vmem>>, vector<4x128xf32>,
    %c7_i32 = arith.constant 7 : i32
    %74 = tpu.dynamic_rotate %61 by %c7_i32 dim 1 : vector<4x128xf32>, i32 -> vector<4x128xf32>
    %75 = vector.extract_strided_slice %62 {offsets = [2, 0], sizes = [1, 128], strides = [1, 1]} : vector<9x128xf32> to vector<1x128xf32>
    %76 = vector.broadcast %75 : vector<1x128xf32> to vector<4x128xf32>
    %77 = arith.mulf %74, %76 : vector<4x128xf32>
    %c8 = arith.constant 8 : index
    %c0_32 = arith.constant 0 : index
    %78 = vector.load %arg11[%c8, %c0_32] : memref<72x512xf32, #tpu.memory_space<vmem>>, vector<4x128xf32>
    tpu.vector_store %arg11[%c8, %c0_32], %77 {strides = array<i32>} : memref<72x512xf32, #tpu.memory_space<vmem>>, vector<4x128xf32>,
    %c1_i32_33 = arith.constant 1 : i32
    %79 = tpu.dynamic_rotate %61 by %c1_i32_33 dim 1 : vector<4x128xf32>, i32 -> vector<4x128xf32>
    %80 = vector.extract_strided_slice %62 {offsets = [3, 0], sizes = [1, 128], strides = [1, 1]} : vector<9x128xf32> to vector<1x128xf32>
    %81 = vector.broadcast %80 : vector<1x128xf32> to vector<4x128xf32>
    %82 = arith.mulf %79, %81 : vector<4x128xf32>
    %c12_34 = arith.constant 12 : index
    %c0_35 = arith.constant 0 : index
    %83 = vector.load %arg11[%c12_34, %c0_35] : memref<72x512xf32, #tpu.memory_space<vmem>>, vector<4x128xf32>
    tpu.vector_store %arg11[%c12_34, %c0_35], %82 {strides = array<i32>} : memref<72x512xf32, #tpu.memory_space<vmem>>, vector<4x128xf32>,
    %c16 = arith.constant 16 : index
    %c0_36 = arith.constant 0 : index
    %84 = vector.load %arg11[%c16, %c0_36] : memref<72x512xf32, #tpu.memory_space<vmem>>, vector<4x128xf32>
    tpu.vector_store %arg11[%c16, %c0_36], %61 {strides = array<i32>} : memref<72x512xf32, #tpu.memory_space<vmem>>, vector<4x128xf32>,
    %c127_i32 = arith.constant 127 : i32
    %85 = tpu.dynamic_rotate %61 by %c127_i32 dim 1 : vector<4x128xf32>, i32 -> vector<4x128xf32>
    %86 = vector.extract_strided_slice %62 {offsets = [5, 0], sizes = [1, 128], strides = [1, 1]} : vector<9x128xf32> to vector<1x128xf32>
    %87 = vector.broadcast %86 : vector<1x128xf32> to vector<4x128xf32>
    %88 = arith.mulf %85, %87 : vector<4x128xf32>
    %c20 = arith.constant 20 : index
    %c0_37 = arith.constant 0 : index
    %89 = vector.load %arg11[%c20, %c0_37] : memref<72x512xf32, #tpu.memory_space<vmem>>, vector<4x128xf32>
    tpu.vector_store %arg11[%c20, %c0_37], %88 {strides = array<i32>} : memref<72x512xf32, #tpu.memory_space<vmem>>, vector<4x128xf32>,
    %c121_i32 = arith.constant 121 : i32
    %90 = tpu.dynamic_rotate %61 by %c121_i32 dim 1 : vector<4x128xf32>, i32 -> vector<4x128xf32>
    %91 = vector.extract_strided_slice %62 {offsets = [6, 0], sizes = [1, 128], strides = [1, 1]} : vector<9x128xf32> to vector<1x128xf32>
    %92 = vector.broadcast %91 : vector<1x128xf32> to vector<4x128xf32>
    %93 = arith.mulf %90, %92 : vector<4x128xf32>
    %c24_38 = arith.constant 24 : index
    %c0_39 = arith.constant 0 : index
    %94 = vector.load %arg11[%c24_38, %c0_39] : memref<72x512xf32, #tpu.memory_space<vmem>>, vector<4x128xf32>
    tpu.vector_store %arg11[%c24_38, %c0_39], %93 {strides = array<i32>} : memref<72x512xf32, #tpu.memory_space<vmem>>, vector<4x128xf32>,
    %c120_i32 = arith.constant 120 : i32
    %95 = tpu.dynamic_rotate %61 by %c120_i32 dim 1 : vector<4x128xf32>, i32 -> vector<4x128xf32>
    %96 = vector.extract_strided_slice %62 {offsets = [7, 0], sizes = [1, 128], strides = [1, 1]} : vector<9x128xf32> to vector<1x128xf32>
    %97 = vector.broadcast %96 : vector<1x128xf32> to vector<4x128xf32>
    %98 = arith.mulf %95, %97 : vector<4x128xf32>
    %c28 = arith.constant 28 : index
    %c0_40 = arith.constant 0 : index
    %99 = vector.load %arg11[%c28, %c0_40] : memref<72x512xf32, #tpu.memory_space<vmem>>, vector<4x128xf32>
    tpu.vector_store %arg11[%c28, %c0_40], %98 {strides = array<i32>} : memref<72x512xf32, #tpu.memory_space<vmem>>, vector<4x128xf32>,
    %c119_i32 = arith.constant 119 : i32
    %100 = tpu.dynamic_rotate %61 by %c119_i32 dim 1 : vector<4x128xf32>, i32 -> vector<4x128xf32>
    %101 = vector.extract_strided_slice %62 {offsets = [8, 0], sizes = [1, 128], strides = [1, 1]} : vector<9x128xf32> to vector<1x128xf32>
    %102 = vector.broadcast %101 : vector<1x128xf32> to vector<4x128xf32>
    %103 = arith.mulf %100, %102 : vector<4x128xf32>
    %c32 = arith.constant 32 : index
    %c0_41 = arith.constant 0 : index
    %104 = vector.load %arg11[%c32, %c0_41] : memref<72x512xf32, #tpu.memory_space<vmem>>, vector<4x128xf32>
    tpu.vector_store %arg11[%c32, %c0_41], %103 {strides = array<i32>} : memref<72x512xf32, #tpu.memory_space<vmem>>, vector<4x128xf32>,
    %c0_42 = arith.constant 0 : index
    %c0_43 = arith.constant 0 : index
    %105 = vector.load %arg11[%c0_42, %c0_43] : memref<72x512xf32, #tpu.memory_space<vmem>>, vector<36x128xf32>
    %106 = arith.truncf %105 : vector<36x128xf32> to vector<36x128xbf16>
    %cst_44 = arith.constant dense<0.000000e+00> : vector<8x128xf32>
    %107 = tpu.matmul %63, %106, %cst_44 {dimension_numbers = #tpu.dot_dimension_numbers<[1], [0], [0], [1], [0, 0, 1, 1], [], []>} : vector<8x36xbf16>, vector<36x128xbf16>, vector<8x128xf32> -> vector<8x128xf32>
    %108 = vector.broadcast %3 : vector<8x1xf32> to vector<8x128xf32>
    %109 = arith.addf %107, %108 : vector<8x128xf32>
    %c0_45 = arith.constant 0 : index
    %c0_46 = arith.constant 0 : index
    %110 = vector.load %arg8[%c0_45, %c0_46] : memref<128x512xf32, #tpu.memory_space<vmem>>, vector<128x512xf32>
    %cst_47 = arith.constant dense<0.000000e+00> : vector<8x512xf32>
    %111 = tpu.matmul %109, %110, %cst_47 {dimension_numbers = #tpu.dot_dimension_numbers<[1], [0], [0], [1], [0, 0, 1, 1], [], []>} : vector<8x128xf32>, vector<128x512xf32>, vector<8x512xf32> -> vector<8x512xf32>
    %c0_48 = arith.constant 0 : index
    %c0_49 = arith.constant 0 : index
    %112 = vector.load %arg4[%c0_48, %c0_49] : memref<4x72xbf16, #tpu.memory_space<vmem>>, vector<4x72xbf16>
    %c17_i32_50 = arith.constant 17 : i32
    %113 = tpu.dynamic_rotate %111 by %c17_i32_50 dim 1 : vector<8x512xf32>, i32 -> vector<8x512xf32>
    %114 = vector.extract_strided_slice %6 {offsets = [0, 0], sizes = [1, 512], strides = [1, 1]} : vector<9x512xf32> to vector<1x512xf32>
    %115 = vector.broadcast %114 : vector<1x512xf32> to vector<8x512xf32>
    %116 = arith.mulf %113, %115 : vector<8x512xf32>
    %c0_51 = arith.constant 0 : index
    %c0_52 = arith.constant 0 : index
    %117 = vector.load %arg11[%c0_51, %c0_52] : memref<72x512xf32, #tpu.memory_space<vmem>>, vector<8x512xf32>
    tpu.vector_store %arg11[%c0_51, %c0_52], %116 {strides = array<i32>} : memref<72x512xf32, #tpu.memory_space<vmem>>, vector<8x512xf32>,
    %c16_i32_53 = arith.constant 16 : i32
    %118 = tpu.dynamic_rotate %111 by %c16_i32_53 dim 1 : vector<8x512xf32>, i32 -> vector<8x512xf32>
    %119 = vector.extract_strided_slice %6 {offsets = [1, 0], sizes = [1, 512], strides = [1, 1]} : vector<9x512xf32> to vector<1x512xf32>
    %120 = vector.broadcast %119 : vector<1x512xf32> to vector<8x512xf32>
    %121 = arith.mulf %118, %120 : vector<8x512xf32>
    %c8_54 = arith.constant 8 : index
    %c0_55 = arith.constant 0 : index
    %122 = vector.load %arg11[%c8_54, %c0_55] : memref<72x512xf32, #tpu.memory_space<vmem>>, vector<8x512xf32>
    tpu.vector_store %arg11[%c8_54, %c0_55], %121 {strides = array<i32>} : memref<72x512xf32, #tpu.memory_space<vmem>>, vector<8x512xf32>,
    %c15_i32_56 = arith.constant 15 : i32
    %123 = tpu.dynamic_rotate %111 by %c15_i32_56 dim 1 : vector<8x512xf32>, i32 -> vector<8x512xf32>
    %124 = vector.extract_strided_slice %6 {offsets = [2, 0], sizes = [1, 512], strides = [1, 1]} : vector<9x512xf32> to vector<1x512xf32>
    %125 = vector.broadcast %124 : vector<1x512xf32> to vector<8x512xf32>
    %126 = arith.mulf %123, %125 : vector<8x512xf32>
    %c16_57 = arith.constant 16 : index
    %c0_58 = arith.constant 0 : index
    %127 = vector.load %arg11[%c16_57, %c0_58] : memref<72x512xf32, #tpu.memory_space<vmem>>, vector<8x512xf32>
    tpu.vector_store %arg11[%c16_57, %c0_58], %126 {strides = array<i32>} : memref<72x512xf32, #tpu.memory_space<vmem>>, vector<8x512xf32>,
    %c1_i32_59 = arith.constant 1 : i32
    %128 = tpu.dynamic_rotate %111 by %c1_i32_59 dim 1 : vector<8x512xf32>, i32 -> vector<8x512xf32>
    %129 = vector.extract_strided_slice %6 {offsets = [3, 0], sizes = [1, 512], strides = [1, 1]} : vector<9x512xf32> to vector<1x512xf32>
    %130 = vector.broadcast %129 : vector<1x512xf32> to vector<8x512xf32>
    %131 = arith.mulf %128, %130 : vector<8x512xf32>
    %c24_60 = arith.constant 24 : index
    %c0_61 = arith.constant 0 : index
    %132 = vector.load %arg11[%c24_60, %c0_61] : memref<72x512xf32, #tpu.memory_space<vmem>>, vector<8x512xf32>
    tpu.vector_store %arg11[%c24_60, %c0_61], %131 {strides = array<i32>} : memref<72x512xf32, #tpu.memory_space<vmem>>, vector<8x512xf32>,
    %c32_62 = arith.constant 32 : index
    %c0_63 = arith.constant 0 : index
    %133 = vector.load %arg11[%c32_62, %c0_63] : memref<72x512xf32, #tpu.memory_space<vmem>>, vector<8x512xf32>
    tpu.vector_store %arg11[%c32_62, %c0_63], %111 {strides = array<i32>} : memref<72x512xf32, #tpu.memory_space<vmem>>, vector<8x512xf32>,
    %c511_i32_64 = arith.constant 511 : i32
    %134 = tpu.dynamic_rotate %111 by %c511_i32_64 dim 1 : vector<8x512xf32>, i32 -> vector<8x512xf32>
    %135 = vector.extract_strided_slice %6 {offsets = [5, 0], sizes = [1, 512], strides = [1, 1]} : vector<9x512xf32> to vector<1x512xf32>
    %136 = vector.broadcast %135 : vector<1x512xf32> to vector<8x512xf32>
    %137 = arith.mulf %134, %136 : vector<8x512xf32>
    %c40 = arith.constant 40 : index
    %c0_65 = arith.constant 0 : index
    %138 = vector.load %arg11[%c40, %c0_65] : memref<72x512xf32, #tpu.memory_space<vmem>>, vector<8x512xf32>
    tpu.vector_store %arg11[%c40, %c0_65], %137 {strides = array<i32>} : memref<72x512xf32, #tpu.memory_space<vmem>>, vector<8x512xf32>,
    %c497_i32_66 = arith.constant 497 : i32
    %139 = tpu.dynamic_rotate %111 by %c497_i32_66 dim 1 : vector<8x512xf32>, i32 -> vector<8x512xf32>
    %140 = vector.extract_strided_slice %6 {offsets = [6, 0], sizes = [1, 512], strides = [1, 1]} : vector<9x512xf32> to vector<1x512xf32>
    %141 = vector.broadcast %140 : vector<1x512xf32> to vector<8x512xf32>
    %142 = arith.mulf %139, %141 : vector<8x512xf32>
    %c48 = arith.constant 48 : index
    %c0_67 = arith.constant 0 : index
    %143 = vector.load %arg11[%c48, %c0_67] : memref<72x512xf32, #tpu.memory_space<vmem>>, vector<8x512xf32>
    tpu.vector_store %arg11[%c48, %c0_67], %142 {strides = array<i32>} : memref<72x512xf32, #tpu.memory_space<vmem>>, vector<8x512xf32>,
    %c496_i32_68 = arith.constant 496 : i32
    %144 = tpu.dynamic_rotate %111 by %c496_i32_68 dim 1 : vector<8x512xf32>, i32 -> vector<8x512xf32>
    %145 = vector.extract_strided_slice %6 {offsets = [7, 0], sizes = [1, 512], strides = [1, 1]} : vector<9x512xf32> to vector<1x512xf32>
    %146 = vector.broadcast %145 : vector<1x512xf32> to vector<8x512xf32>
    %147 = arith.mulf %144, %146 : vector<8x512xf32>
    %c56 = arith.constant 56 : index
    %c0_69 = arith.constant 0 : index
    %148 = vector.load %arg11[%c56, %c0_69] : memref<72x512xf32, #tpu.memory_space<vmem>>, vector<8x512xf32>
    tpu.vector_store %arg11[%c56, %c0_69], %147 {strides = array<i32>} : memref<72x512xf32, #tpu.memory_space<vmem>>, vector<8x512xf32>,
    %c495_i32_70 = arith.constant 495 : i32
    %149 = tpu.dynamic_rotate %111 by %c495_i32_70 dim 1 : vector<8x512xf32>, i32 -> vector<8x512xf32>
    %150 = vector.extract_strided_slice %6 {offsets = [8, 0], sizes = [1, 512], strides = [1, 1]} : vector<9x512xf32> to vector<1x512xf32>
    %151 = vector.broadcast %150 : vector<1x512xf32> to vector<8x512xf32>
    %152 = arith.mulf %149, %151 : vector<8x512xf32>
    %c64 = arith.constant 64 : index
    %c0_71 = arith.constant 0 : index
    %153 = vector.load %arg11[%c64, %c0_71] : memref<72x512xf32, #tpu.memory_space<vmem>>, vector<8x512xf32>
    tpu.vector_store %arg11[%c64, %c0_71], %152 {strides = array<i32>} : memref<72x512xf32, #tpu.memory_space<vmem>>, vector<8x512xf32>,
    %c0_72 = arith.constant 0 : index
    %c0_73 = arith.constant 0 : index
    %154 = vector.load %arg11[%c0_72, %c0_73] : memref<72x512xf32, #tpu.memory_space<vmem>>, vector<72x512xf32>
    %155 = arith.truncf %154 : vector<72x512xf32> to vector<72x512xbf16>
    %cst_74 = arith.constant dense<0.000000e+00> : vector<4x512xf32>
    %156 = tpu.matmul %112, %155, %cst_74 {dimension_numbers = #tpu.dot_dimension_numbers<[1], [0], [0], [1], [0, 0, 1, 1], [], []>} : vector<4x72xbf16>, vector<72x512xbf16>, vector<4x512xf32> -> vector<4x512xf32>
    %157 = vector.broadcast %4 : vector<4x1xf32> to vector<4x512xf32>
    %158 = arith.addf %156, %157 : vector<4x512xf32>
    %c0_75 = arith.constant 0 : index
    %c0_76 = arith.constant 0 : index
    %159 = vector.load %arg5[%c0_75, %c0_76] : memref<3x36xbf16, #tpu.memory_space<vmem>>, vector<3x36xbf16>
    %c17_i32_77 = arith.constant 17 : i32
    %160 = tpu.dynamic_rotate %158 by %c17_i32_77 dim 1 : vector<4x512xf32>, i32 -> vector<4x512xf32>
    %161 = vector.extract_strided_slice %6 {offsets = [0, 0], sizes = [1, 512], strides = [1, 1]} : vector<9x512xf32> to vector<1x512xf32>
    %162 = vector.broadcast %161 : vector<1x512xf32> to vector<4x512xf32>
    %163 = arith.mulf %160, %162 : vector<4x512xf32>
    %c0_78 = arith.constant 0 : index
    %c0_79 = arith.constant 0 : index
    %164 = vector.load %arg11[%c0_78, %c0_79] : memref<72x512xf32, #tpu.memory_space<vmem>>, vector<4x512xf32>
    tpu.vector_store %arg11[%c0_78, %c0_79], %163 {strides = array<i32>} : memref<72x512xf32, #tpu.memory_space<vmem>>, vector<4x512xf32>,
    %c16_i32_80 = arith.constant 16 : i32
    %165 = tpu.dynamic_rotate %158 by %c16_i32_80 dim 1 : vector<4x512xf32>, i32 -> vector<4x512xf32>
    %166 = vector.extract_strided_slice %6 {offsets = [1, 0], sizes = [1, 512], strides = [1, 1]} : vector<9x512xf32> to vector<1x512xf32>
    %167 = vector.broadcast %166 : vector<1x512xf32> to vector<4x512xf32>
    %168 = arith.mulf %165, %167 : vector<4x512xf32>
    %c4_81 = arith.constant 4 : index
    %c0_82 = arith.constant 0 : index
    %169 = vector.load %arg11[%c4_81, %c0_82] : memref<72x512xf32, #tpu.memory_space<vmem>>, vector<4x512xf32>
    tpu.vector_store %arg11[%c4_81, %c0_82], %168 {strides = array<i32>} : memref<72x512xf32, #tpu.memory_space<vmem>>, vector<4x512xf32>,
    %c15_i32_83 = arith.constant 15 : i32
    %170 = tpu.dynamic_rotate %158 by %c15_i32_83 dim 1 : vector<4x512xf32>, i32 -> vector<4x512xf32>
    %171 = vector.extract_strided_slice %6 {offsets = [2, 0], sizes = [1, 512], strides = [1, 1]} : vector<9x512xf32> to vector<1x512xf32>
    %172 = vector.broadcast %171 : vector<1x512xf32> to vector<4x512xf32>
    %173 = arith.mulf %170, %172 : vector<4x512xf32>
    %c8_84 = arith.constant 8 : index
    %c0_85 = arith.constant 0 : index
    %174 = vector.load %arg11[%c8_84, %c0_85] : memref<72x512xf32, #tpu.memory_space<vmem>>, vector<4x512xf32>
    tpu.vector_store %arg11[%c8_84, %c0_85], %173 {strides = array<i32>} : memref<72x512xf32, #tpu.memory_space<vmem>>, vector<4x512xf32>,
    %c1_i32_86 = arith.constant 1 : i32
    %175 = tpu.dynamic_rotate %158 by %c1_i32_86 dim 1 : vector<4x512xf32>, i32 -> vector<4x512xf32>
    %176 = vector.extract_strided_slice %6 {offsets = [3, 0], sizes = [1, 512], strides = [1, 1]} : vector<9x512xf32> to vector<1x512xf32>
    %177 = vector.broadcast %176 : vector<1x512xf32> to vector<4x512xf32>
    %178 = arith.mulf %175, %177 : vector<4x512xf32>
    %c12_87 = arith.constant 12 : index
    %c0_88 = arith.constant 0 : index
    %179 = vector.load %arg11[%c12_87, %c0_88] : memref<72x512xf32, #tpu.memory_space<vmem>>, vector<4x512xf32>
    tpu.vector_store %arg11[%c12_87, %c0_88], %178 {strides = array<i32>} : memref<72x512xf32, #tpu.memory_space<vmem>>, vector<4x512xf32>,
    %c16_89 = arith.constant 16 : index
    %c0_90 = arith.constant 0 : index
    %180 = vector.load %arg11[%c16_89, %c0_90] : memref<72x512xf32, #tpu.memory_space<vmem>>, vector<4x512xf32>
    tpu.vector_store %arg11[%c16_89, %c0_90], %158 {strides = array<i32>} : memref<72x512xf32, #tpu.memory_space<vmem>>, vector<4x512xf32>,
    %c511_i32_91 = arith.constant 511 : i32
    %181 = tpu.dynamic_rotate %158 by %c511_i32_91 dim 1 : vector<4x512xf32>, i32 -> vector<4x512xf32>
    %182 = vector.extract_strided_slice %6 {offsets = [5, 0], sizes = [1, 512], strides = [1, 1]} : vector<9x512xf32> to vector<1x512xf32>
    %183 = vector.broadcast %182 : vector<1x512xf32> to vector<4x512xf32>
    %184 = arith.mulf %181, %183 : vector<4x512xf32>
    %c20_92 = arith.constant 20 : index
    %c0_93 = arith.constant 0 : index
    %185 = vector.load %arg11[%c20_92, %c0_93] : memref<72x512xf32, #tpu.memory_space<vmem>>, vector<4x512xf32>
    tpu.vector_store %arg11[%c20_92, %c0_93], %184 {strides = array<i32>} : memref<72x512xf32, #tpu.memory_space<vmem>>, vector<4x512xf32>,
    %c497_i32_94 = arith.constant 497 : i32
    %186 = tpu.dynamic_rotate %158 by %c497_i32_94 dim 1 : vector<4x512xf32>, i32 -> vector<4x512xf32>
    %187 = vector.extract_strided_slice %6 {offsets = [6, 0], sizes = [1, 512], strides = [1, 1]} : vector<9x512xf32> to vector<1x512xf32>
    %188 = vector.broadcast %187 : vector<1x512xf32> to vector<4x512xf32>
    %189 = arith.mulf %186, %188 : vector<4x512xf32>
    %c24_95 = arith.constant 24 : index
    %c0_96 = arith.constant 0 : index
    %190 = vector.load %arg11[%c24_95, %c0_96] : memref<72x512xf32, #tpu.memory_space<vmem>>, vector<4x512xf32>
    tpu.vector_store %arg11[%c24_95, %c0_96], %189 {strides = array<i32>} : memref<72x512xf32, #tpu.memory_space<vmem>>, vector<4x512xf32>,
    %c496_i32_97 = arith.constant 496 : i32
    %191 = tpu.dynamic_rotate %158 by %c496_i32_97 dim 1 : vector<4x512xf32>, i32 -> vector<4x512xf32>
    %192 = vector.extract_strided_slice %6 {offsets = [7, 0], sizes = [1, 512], strides = [1, 1]} : vector<9x512xf32> to vector<1x512xf32>
    %193 = vector.broadcast %192 : vector<1x512xf32> to vector<4x512xf32>
    %194 = arith.mulf %191, %193 : vector<4x512xf32>
    %c28_98 = arith.constant 28 : index
    %c0_99 = arith.constant 0 : index
    %195 = vector.load %arg11[%c28_98, %c0_99] : memref<72x512xf32, #tpu.memory_space<vmem>>, vector<4x512xf32>
    tpu.vector_store %arg11[%c28_98, %c0_99], %194 {strides = array<i32>} : memref<72x512xf32, #tpu.memory_space<vmem>>, vector<4x512xf32>,
    %c495_i32_100 = arith.constant 495 : i32
    %196 = tpu.dynamic_rotate %158 by %c495_i32_100 dim 1 : vector<4x512xf32>, i32 -> vector<4x512xf32>
    %197 = vector.extract_strided_slice %6 {offsets = [8, 0], sizes = [1, 512], strides = [1, 1]} : vector<9x512xf32> to vector<1x512xf32>
    %198 = vector.broadcast %197 : vector<1x512xf32> to vector<4x512xf32>
    %199 = arith.mulf %196, %198 : vector<4x512xf32>
    %c32_101 = arith.constant 32 : index
    %c0_102 = arith.constant 0 : index
    %200 = vector.load %arg11[%c32_101, %c0_102] : memref<72x512xf32, #tpu.memory_space<vmem>>, vector<4x512xf32>
    tpu.vector_store %arg11[%c32_101, %c0_102], %199 {strides = array<i32>} : memref<72x512xf32, #tpu.memory_space<vmem>>, vector<4x512xf32>,
    %c0_103 = arith.constant 0 : index
    %c0_104 = arith.constant 0 : index
    %201 = vector.load %arg11[%c0_103, %c0_104] : memref<72x512xf32, #tpu.memory_space<vmem>>, vector<36x512xf32>
    %202 = arith.truncf %201 : vector<36x512xf32> to vector<36x512xbf16>
    %cst_105 = arith.constant dense<0.000000e+00> : vector<3x512xf32>
    %203 = tpu.matmul %159, %202, %cst_105 {dimension_numbers = #tpu.dot_dimension_numbers<[1], [0], [0], [1], [0, 0, 1, 1], [], []>} : vector<3x36xbf16>, vector<36x512xbf16>, vector<3x512xf32> -> vector<3x512xf32>
    %204 = vector.broadcast %5 : vector<3x1xf32> to vector<3x512xf32>
    %205 = arith.addf %203, %204 : vector<3x512xf32>
    %206 = arith.negf %205 : vector<3x512xf32>
    %207 = math.exp %206 : vector<3x512xf32>
    %cst_106 = arith.constant 1.000000e+00 : f32
    %208 = vector.broadcast %cst_106 : f32 to vector<3x512xf32>
    %209 = arith.addf %208, %207 : vector<3x512xf32>
    %210 = arith.divf %208, %209 : vector<3x512xf32>
    %c0_107 = arith.constant 0 : index
    %c0_108 = arith.constant 0 : index
    %211 = vector.load %arg10[%c0_107, %c0_108] : memref<3x512xf32, #tpu.memory_space<vmem>>, vector<3x512xf32>
    tpu.vector_store %arg10[%c0_107, %c0_108], %210 {strides = array<i32>} : memref<3x512xf32, #tpu.memory_space<vmem>>, vector<3x512xf32>,
    return
  }
  func.func @transform_0(%arg0: i32) -> (i32, i32) {
    %c0_i32 = arith.constant 0 : i32
    %c0_i32_0 = arith.constant 0 : i32
    return %c0_i32, %arg0 : i32, i32
  }
  func.func @transform_1(%arg0: i32) -> (i32, i32) {
    %c0_i32 = arith.constant 0 : i32
    %c0_i32_0 = arith.constant 0 : i32
    %c0_i32_1 = arith.constant 0 : i32
    return %c0_i32, %c0_i32_0 : i32, i32
  }
  func.func @transform_2(%arg0: i32) -> (i32, i32) {
    %c0_i32 = arith.constant 0 : i32
    %c0_i32_0 = arith.constant 0 : i32
    %c0_i32_1 = arith.constant 0 : i32
    return %c0_i32, %c0_i32_0 : i32, i32
  }
  func.func @transform_3(%arg0: i32) -> (i32, i32) {
    %c0_i32 = arith.constant 0 : i32
    %c0_i32_0 = arith.constant 0 : i32
    %c0_i32_1 = arith.constant 0 : i32
    return %c0_i32, %c0_i32_0 : i32, i32
  }
  func.func @transform_4(%arg0: i32) -> (i32, i32) {
    %c0_i32 = arith.constant 0 : i32
    %c0_i32_0 = arith.constant 0 : i32
    %c0_i32_1 = arith.constant 0 : i32
    return %c0_i32, %c0_i32_0 : i32, i32
  }
  func.func @transform_5(%arg0: i32) -> (i32, i32) {
    %c0_i32 = arith.constant 0 : i32
    %c0_i32_0 = arith.constant 0 : i32
    %c0_i32_1 = arith.constant 0 : i32
    return %c0_i32, %c0_i32_0 : i32, i32
  }
  func.func @transform_6(%arg0: i32) -> (i32, i32) {
    %c0_i32 = arith.constant 0 : i32
    %c0_i32_0 = arith.constant 0 : i32
    %c0_i32_1 = arith.constant 0 : i32
    return %c0_i32, %c0_i32_0 : i32, i32
  }
  func.func @transform_7(%arg0: i32) -> (i32, i32) {
    %c0_i32 = arith.constant 0 : i32
    %c0_i32_0 = arith.constant 0 : i32
    %c0_i32_1 = arith.constant 0 : i32
    return %c0_i32, %c0_i32_0 : i32, i32
  }
  func.func @transform_8(%arg0: i32) -> (i32, i32) {
    %c0_i32 = arith.constant 0 : i32
    %c0_i32_0 = arith.constant 0 : i32
    %c0_i32_1 = arith.constant 0 : i32
    return %c0_i32, %c0_i32_0 : i32, i32
  }
  func.func @transform_9(%arg0: i32) -> (i32, i32) {
    %c0_i32 = arith.constant 0 : i32
    %c0_i32_0 = arith.constant 0 : i32
    return %c0_i32, %arg0 : i32, i32
  }
}

</mosaic_0001>

<llo_original>
// kernel: _lambda_.1
$region0: #{_lambda_.1}
  #allocation0 [shape = 'u32[]', space=smem, size = 0x4, offset = 0x4, fixed_abs, tag = 'smem constant byte address 0x4 - core index']
  #allocation1 [shape = 'u32[72,128]{1,0:T(1,128)}', space=vmem, size = 0x9000, scoped, tag = 'internal scratch']
  #allocation2 [shape = 'f32[72,512]{1,0:T(8,128)}', space=vmem, size = 0x24000, scoped, tag = 'scratch operand']
  %s0 = inlined_call_operand.vmem [shape: f32[3,512], index: 0, kind: input, shape index: {}]
  %s1 = inlined_call_operand.vmem [shape: bf16[4,27], index: 1, kind: input, shape index: {}]
  %s2 = inlined_call_operand.vmem [shape: bf16[8,36], index: 2, kind: input, shape index: {}]
  %s3 = inlined_call_operand.vmem [shape: bf16[4,72], index: 3, kind: input, shape index: {}]
  %s4 = inlined_call_operand.vmem [shape: bf16[3,36], index: 4, kind: input, shape index: {}]
  %s5 = inlined_call_operand.vmem [shape: f32[19,1], index: 5, kind: input, shape index: {}]
  %s6 = inlined_call_operand.vmem [shape: f32[512,128], index: 6, kind: input, shape index: {}]
  %s7 = inlined_call_operand.vmem [shape: f32[128,512], index: 7, kind: input, shape index: {}]
  %s8 = inlined_call_operand.vmem [shape: f32[18,512], index: 8, kind: input, shape index: {}]
  %s9 = inlined_call_operand.vmem [shape: f32[3,512], index: 9, kind: output, shape index: {}]
  %s10 = sld [smem:[#allocation0]]
  $region46: #{_lambda_.1} parent=0
    _
  %s12 = ssub.s32 1, %s10
  %s13 = scalar_select 0, %s12, %s10
  // Predicated region
  $region2: #{_lambda_.1} parent=0 // pred_check
    _
  $region3: #{_lambda_.1} parent=0 // pred_check_branch
    %15 = sbr.rel (0) target = $region5
  $region4: #{_lambda_.1} parent=0 // pred_region
    _
  $region5: #{_lambda_.1} parent=0 // pred_fallthru
    _
  // Predicated region
  $region6: #{_lambda_.1} parent=0 // pred_check
    _
  $region7: #{_lambda_.1} parent=0 // pred_check_branch
    %17 = sbr.rel (0) target = $region9
  $region8: #{_lambda_.1} parent=0 // pred_region
    _
  $region9: #{_lambda_.1} parent=0 // pred_fallthru
    _
  // Predicated region
  $region10: #{_lambda_.1} parent=0 // pred_check
    _
  $region11: #{_lambda_.1} parent=0 // pred_check_branch
    %19 = sbr.rel (0) target = $region13
  $region12: #{_lambda_.1} parent=0 // pred_region
    _
  $region13: #{_lambda_.1} parent=0 // pred_fallthru
    _
  // Predicated region
  $region14: #{_lambda_.1} parent=0 // pred_check
    _
  $region15: #{_lambda_.1} parent=0 // pred_check_branch
    %21 = sbr.rel (0) target = $region17
  $region16: #{_lambda_.1} parent=0 // pred_region
    _
  $region17: #{_lambda_.1} parent=0 // pred_fallthru
    _
  // Predicated region
  $region18: #{_lambda_.1} parent=0 // pred_check
    _
  $region19: #{_lambda_.1} parent=0 // pred_check_branch
    %23 = sbr.rel (0) target = $region21
  $region20: #{_lambda_.1} parent=0 // pred_region
    _
  $region21: #{_lambda_.1} parent=0 // pred_fallthru
    _
  // Predicated region
  $region22: #{_lambda_.1} parent=0 // pred_check
    _
  $region23: #{_lambda_.1} parent=0 // pred_check_branch
    %25 = sbr.rel (0) target = $region25
  $region24: #{_lambda_.1} parent=0 // pred_region
    _
  $region25: #{_lambda_.1} parent=0 // pred_fallthru
    _
  // Predicated region
  $region26: #{_lambda_.1} parent=0 // pred_check
    _
  $region27: #{_lambda_.1} parent=0 // pred_check_branch
    %27 = sbr.rel (0) target = $region29
  $region28: #{_lambda_.1} parent=0 // pred_region
    _
  $region29: #{_lambda_.1} parent=0 // pred_fallthru
    _
  // Predicated region
  $region30: #{_lambda_.1} parent=0 // pred_check
    _
  $region31: #{_lambda_.1} parent=0 // pred_check_branch
    %29 = sbr.rel (0) target = $region33
  $region32: #{_lambda_.1} parent=0 // pred_region
    _
  $region33: #{_lambda_.1} parent=0 // pred_fallthru
    _
  // Predicated region
  $region34: #{_lambda_.1} parent=0 // pred_check
    _
  $region35: #{_lambda_.1} parent=0 // pred_check_branch
    %31 = sbr.rel (0) target = $region37
  $region36: #{_lambda_.1} parent=0 // pred_region
    _
  $region37: #{_lambda_.1} parent=0 // pred_fallthru
    _
  %v33 = vld [vmem:[%s0] sm:$0x77]
  %v34 = vld [vmem:[%s0 + $0x8] sm:$0x77]
  %v35 = vld [vmem:[%s5] sm:$0xff]
  %v36 = vld [vmem:[%s5 + $0x8] sm:$0xff]
  %v37 = vld [vmem:[%s5 + $0x10] sm:$0x7]
  %v38 = vld [vmem:[%s8] sm:$0xff]
  %v39 = vld [vmem:[%s8 + $0x8] sm:$0xff]
  %v40 = vld [vmem:[%s8 + $0x10] sm:$0xff]
  %v41 = vld [vmem:[%s8 + $0x18] sm:$0xff]
  %v42 = vld [vmem:[%s8 + $0x20] sm:$0x1]
  %v43 = vld [vmem:[%s8 + $0x28] sm:$0x1]
  %v44 = vld [vmem:[%s8 + $0x30] sm:$0x1]
  %v45 = vld [vmem:[%s8 + $0x38] sm:$0x1]
  %v46 = vld [vmem:[%s1] sm:$0x3]
  %49 = vst [vmem:[#allocation1] ss:$2 sm:$0xff] %v33
  %s50 = scalar_lea.vmem [#allocation1], 16
  %51 = vst [vmem:[%s50] ss:$2 sm:$0xff] %v34
  %v52 = vld.sshfl [vmem:[#allocation1] sm:$0xff pattern:$0x75316420]
  %v53 = vld.sshfl [vmem:[#allocation1 + $0x8] sm:$0xff pattern:$0x75316420]
  %v54 = vld.sshfl [vmem:[#allocation1 + $0x10] sm:$0xff pattern:$0x75316420]
  %v55 = vld.sshfl [vmem:[#allocation1 + $0x18] sm:$0xff pattern:$0x75316420]
  %60 = vrot.lane.b32.xlu0 %v52, 17
  %v61 = vpop.permute.xlu0 %60
  %62 = vrot.lane.b32.xlu0 %v53, 17
  %v63 = vpop.permute.xlu0 %62
  %64 = vrot.lane.b32.xlu0 %v54, 17
  %v65 = vpop.permute.xlu0 %64
  %66 = vrot.lane.b32.xlu0 %v55, 17
  %v67 = vpop.permute.xlu0 %66
  %v68 = vlaneseq
  %v69 = vand.u32 %v68, 127
  %vm70 = vcmp.lt.s32.totalorder %v69, 17
  %v71 = vsel %vm70, %v65, %v67
  %v72 = vsel %vm70, %v63, %v65
  %v73 = vsel %vm70, %v61, %v63
  %v74 = vsel %vm70, %v67, %v61
  %v75 = vperm.slane %v38, 0
  %v76 = vperm.slane %v39, 0
  %v77 = vperm.slane %v40, 0
  %v78 = vperm.slane %v41, 0
  %v79 = vmul.f32 %v74, %v75
  %v80 = vmul.f32 %v73, %v76
  %v81 = vmul.f32 %v72, %v77
  %v82 = vmul.f32 %v71, %v78
  %83 = vst [vmem:[#allocation2] sm:$0x7] %v79
  %84 = vst [vmem:[#allocation2 + $0x8] sm:$0x7] %v80
  %85 = vst [vmem:[#allocation2 + $0x10] sm:$0x7] %v81
  %86 = vst [vmem:[#allocation2 + $0x18] sm:$0x7] %v82
  %87 = vst [vmem:[#allocation1] ss:$2 sm:$0xff] %v33
  %s88 = scalar_lea.vmem [#allocation1], 16
  %89 = vst [vmem:[%s88] ss:$2 sm:$0xff] %v34
  %v90 = vld.sshfl [vmem:[#allocation1] sm:$0xff pattern:$0x75316420]
  %v91 = vld.sshfl [vmem:[#allocation1 + $0x8] sm:$0xff pattern:$0x75316420]
  %v92 = vld.sshfl [vmem:[#allocation1 + $0x10] sm:$0xff pattern:$0x75316420]
  %v93 = vld.sshfl [vmem:[#allocation1 + $0x18] sm:$0xff pattern:$0x75316420]
  %98 = vrot.lane.b32.xlu0 %v90, 16
  %v99 = vpop.permute.xlu0 %98
  %100 = vrot.lane.b32.xlu0 %v91, 16
  %v101 = vpop.permute.xlu0 %100
  %102 = vrot.lane.b32.xlu0 %v92, 16
  %v103 = vpop.permute.xlu0 %102
  %104 = vrot.lane.b32.xlu0 %v93, 16
  %v105 = vpop.permute.xlu0 %104
  %vm106 = vcmp.lt.s32.totalorder %v69, 16
  %v107 = vsel %vm106, %v103, %v105
  %v108 = vsel %vm106, %v101, %v103
  %v109 = vsel %vm106, %v99, %v101
  %v110 = vsel %vm106, %v105, %v99
  %v111 = vperm.slane %v38, 1
  %v112 = vperm.slane %v39, 1
  %v113 = vperm.slane %v40, 1
  %v114 = vperm.slane %v41, 1
  %v115 = vmul.f32 %v110, %v111
  %v116 = vmul.f32 %v109, %v112
  %v117 = vmul.f32 %v108, %v113
  %v118 = vmul.f32 %v107, %v114
  %v123 = vrot.slane %v115, 5
  %v124 = vrot.slane %v116, 5
  %v125 = vrot.slane %v117, 5
  %v126 = vrot.slane %v118, 5
  %131 = vst [vmem:[#allocation2] sm:$0x38] %v123
  %132 = vst [vmem:[#allocation2 + $0x8] sm:$0x38] %v124
  %133 = vst [vmem:[#allocation2 + $0x10] sm:$0x38] %v125
  %134 = vst [vmem:[#allocation2 + $0x18] sm:$0x38] %v126
  %135 = vst [vmem:[#allocation1] ss:$2 sm:$0xff] %v33
  %s136 = scalar_lea.vmem [#allocation1], 16
  %137 = vst [vmem:[%s136] ss:$2 sm:$0xff] %v34
  %v138 = vld.sshfl [vmem:[#allocation1] sm:$0xff pattern:$0x75316420]
  %v139 = vld.sshfl [vmem:[#allocation1 + $0x8] sm:$0xff pattern:$0x75316420]
  %v140 = vld.sshfl [vmem:[#allocation1 + $0x10] sm:$0xff pattern:$0x75316420]
  %v141 = vld.sshfl [vmem:[#allocation1 + $0x18] sm:$0xff pattern:$0x75316420]
  %146 = vrot.lane.b32.xlu0 %v138, 15
  %v147 = vpop.permute.xlu0 %146
  %148 = vrot.lane.b32.xlu0 %v139, 15
  %v149 = vpop.permute.xlu0 %148
  %150 = vrot.lane.b32.xlu0 %v140, 15
  %v151 = vpop.permute.xlu0 %150
  %152 = vrot.lane.b32.xlu0 %v141, 15
  %v153 = vpop.permute.xlu0 %152
  %vm154 = vcmp.lt.s32.totalorder %v69, 15
  %v155 = vsel %vm154, %v151, %v153
  %v156 = vsel %vm154, %v149, %v151
  %v157 = vsel %vm154, %v147, %v149
  %v158 = vsel %vm154, %v153, %v147
  %v159 = vperm.slane %v38, 2
  %v160 = vperm.slane %v39, 2
  %v161 = vperm.slane %v40, 2
  %v162 = vperm.slane %v41, 2
  %v163 = vmul.f32 %v158, %v159
  %v164 = vmul.f32 %v157, %v160
  %v165 = vmul.f32 %v156, %v161
  %v166 = vmul.f32 %v155, %v162
  %v171 = vrot.slane %v163, 2
  %v172 = vrot.slane %v164, 2
  %v173 = vrot.slane %v165, 2
  %v174 = vrot.slane %v166, 2
  %179 = vst [vmem:[#allocation2] sm:$0xc0] %v171
  %180 = vst [vmem:[#allocation2 + $0x8] sm:$0xc0] %v172
  %181 = vst [vmem:[#allocation2 + $0x10] sm:$0xc0] %v173
  %182 = vst [vmem:[#allocation2 + $0x18] sm:$0xc0] %v174
  %183 = vst [vmem:[#allocation2 + $0x20] sm:$0x1] %v171
  %184 = vst [vmem:[#allocation2 + $0x28] sm:$0x1] %v172
  %185 = vst [vmem:[#allocation2 + $0x30] sm:$0x1] %v173
  %186 = vst [vmem:[#allocation2 + $0x38] sm:$0x1] %v174
  %187 = vst [vmem:[#allocation1] ss:$2 sm:$0xff] %v33
  %s188 = scalar_lea.vmem [#allocation1], 16
  %189 = vst [vmem:[%s188] ss:$2 sm:$0xff] %v34
  %v190 = vld.sshfl [vmem:[#allocation1] sm:$0xff pattern:$0x75316420]
  %v191 = vld.sshfl [vmem:[#allocation1 + $0x8] sm:$0xff pattern:$0x75316420]
  %v192 = vld.sshfl [vmem:[#allocation1 + $0x10] sm:$0xff pattern:$0x75316420]
  %v193 = vld.sshfl [vmem:[#allocation1 + $0x18] sm:$0xff pattern:$0x75316420]
  %198 = vrot.lane.b32.xlu0 %v190, 1
  %v199 = vpop.permute.xlu0 %198
  %200 = vrot.lane.b32.xlu0 %v191, 1
  %v201 = vpop.permute.xlu0 %200
  %202 = vrot.lane.b32.xlu0 %v192, 1
  %v203 = vpop.permute.xlu0 %202
  %204 = vrot.lane.b32.xlu0 %v193, 1
  %v205 = vpop.permute.xlu0 %204
  %vm206 = vcmp.lt.s32.totalorder %v69, 1
  %v207 = vsel %vm206, %v203, %v205
  %v208 = vsel %vm206, %v201, %v203
  %v209 = vsel %vm206, %v199, %v201
  %v210 = vsel %vm206, %v205, %v199
  %v211 = vperm.slane %v38, 3
  %v212 = vperm.slane %v39, 3
  %v213 = vperm.slane %v40, 3
  %v214 = vperm.slane %v41, 3
  %v215 = vmul.f32 %v210, %v211
  %v216 = vmul.f32 %v209, %v212
  %v217 = vmul.f32 %v208, %v213
  %v218 = vmul.f32 %v207, %v214
  %v223 = vrot.slane %v215, 7
  %v224 = vrot.slane %v216, 7
  %v225 = vrot.slane %v217, 7
  %v226 = vrot.slane %v218, 7
  %231 = vst [vmem:[#allocation2 + $0x20] sm:$0xe] %v223
  %232 = vst [vmem:[#allocation2 + $0x28] sm:$0xe] %v224
  %233 = vst [vmem:[#allocation2 + $0x30] sm:$0xe] %v225
  %234 = vst [vmem:[#allocation2 + $0x38] sm:$0xe] %v226
  %s235 = scalar_lea.vmem [#allocation1], 1
  %236 = vst [vmem:[%s235] ss:$2 sm:$0xff] %v33
  %s237 = scalar_lea.vmem [#allocation1], 17
  %238 = vst [vmem:[%s237] ss:$2 sm:$0xff] %v34
  %v239 = vld.sshfl [vmem:[#allocation1] sm:$0xff pattern:$0x75316420]
  %v240 = vld.sshfl [vmem:[#allocation1 + $0x8] sm:$0xff pattern:$0x75316420]
  %v241 = vld.sshfl [vmem:[#allocation1 + $0x10] sm:$0xff pattern:$0x75316420]
  %v242 = vld.sshfl [vmem:[#allocation1 + $0x18] sm:$0xff pattern:$0x75316420]
  %247 = vst [vmem:[#allocation2 + $0x20] sm:$0x70] %v239
  %248 = vst [vmem:[#allocation2 + $0x28] sm:$0x70] %v240
  %249 = vst [vmem:[#allocation2 + $0x30] sm:$0x70] %v241
  %250 = vst [vmem:[#allocation2 + $0x38] sm:$0x70] %v242
  %251 = vst [vmem:[#allocation1] ss:$2 sm:$0xff] %v33
  %s252 = scalar_lea.vmem [#allocation1], 16
  %253 = vst [vmem:[%s252] ss:$2 sm:$0xff] %v34
  %v254 = vld.sshfl [vmem:[#allocation1] sm:$0xff pattern:$0x75316420]
  %v255 = vld.sshfl [vmem:[#allocation1 + $0x8] sm:$0xff pattern:$0x75316420]
  %v256 = vld.sshfl [vmem:[#allocation1 + $0x10] sm:$0xff pattern:$0x75316420]
  %v257 = vld.sshfl [vmem:[#allocation1 + $0x18] sm:$0xff pattern:$0x75316420]
  %262 = vrot.lane.b32.xlu0 %v254, 127
  %v263 = vpop.permute.xlu0 %262
  %264 = vrot.lane.b32.xlu0 %v255, 127
  %v265 = vpop.permute.xlu0 %264
  %266 = vrot.lane.b32.xlu0 %v256, 127
  %v267 = vpop.permute.xlu0 %266
  %268 = vrot.lane.b32.xlu0 %v257, 127
  %v269 = vpop.permute.xlu0 %268
  %vm270 = vcmp.lt.s32.totalorder %v69, 127
  %v271 = vsel %vm270, %v267, %v269
  %v272 = vsel %vm270, %v265, %v267
  %v273 = vsel %vm270, %v263, %v265
  %v274 = vsel %vm270, %v269, %v263
  %v275 = vperm.slane %v38, 5
  %v276 = vperm.slane %v39, 5
  %v277 = vperm.slane %v40, 5
  %v278 = vperm.slane %v41, 5
  %v279 = vmul.f32 %v273, %v275
  %v280 = vmul.f32 %v272, %v276
  %v281 = vmul.f32 %v271, %v277
  %v282 = vmul.f32 %v274, %v278
  %v287 = vrot.slane %v279, 1
  %v288 = vrot.slane %v280, 1
  %v289 = vrot.slane %v281, 1
  %v290 = vrot.slane %v282, 1
  %295 = vst [vmem:[#allocation2 + $0x20] sm:$0x80] %v287
  %296 = vst [vmem:[#allocation2 + $0x28] sm:$0x80] %v288
  %297 = vst [vmem:[#allocation2 + $0x30] sm:$0x80] %v289
  %298 = vst [vmem:[#allocation2 + $0x38] sm:$0x80] %v290
  %299 = vst [vmem:[#allocation2 + $0x40] sm:$0x3] %v287
  %300 = vst [vmem:[#allocation2 + $0x48] sm:$0x3] %v288
  %301 = vst [vmem:[#allocation2 + $0x50] sm:$0x3] %v289
  %302 = vst [vmem:[#allocation2 + $0x58] sm:$0x3] %v290
  %303 = vst [vmem:[#allocation1] ss:$2 sm:$0xff] %v33
  %s304 = scalar_lea.vmem [#allocation1], 16
  %305 = vst [vmem:[%s304] ss:$2 sm:$0xff] %v34
  %v306 = vld.sshfl [vmem:[#allocation1] sm:$0xff pattern:$0x75316420]
  %v307 = vld.sshfl [vmem:[#allocation1 + $0x8] sm:$0xff pattern:$0x75316420]
  %v308 = vld.sshfl [vmem:[#allocation1 + $0x10] sm:$0xff pattern:$0x75316420]
  %v309 = vld.sshfl [vmem:[#allocation1 + $0x18] sm:$0xff pattern:$0x75316420]
  %314 = vrot.lane.b32.xlu0 %v306, 113
  %v315 = vpop.permute.xlu0 %314
  %316 = vrot.lane.b32.xlu0 %v307, 113
  %v317 = vpop.permute.xlu0 %316
  %318 = vrot.lane.b32.xlu0 %v308, 113
  %v319 = vpop.permute.xlu0 %318
  %320 = vrot.lane.b32.xlu0 %v309, 113
  %v321 = vpop.permute.xlu0 %320
  %vm322 = vcmp.lt.s32.totalorder %v69, 113
  %v323 = vsel %vm322, %v319, %v321
  %v324 = vsel %vm322, %v317, %v319
  %v325 = vsel %vm322, %v315, %v317
  %v326 = vsel %vm322, %v321, %v315
  %v327 = vperm.slane %v38, 6
  %v328 = vperm.slane %v39, 6
  %v329 = vperm.slane %v40, 6
  %v330 = vperm.slane %v41, 6
  %v331 = vmul.f32 %v325, %v327
  %v332 = vmul.f32 %v324, %v328
  %v333 = vmul.f32 %v323, %v329
  %v334 = vmul.f32 %v326, %v330
  %v339 = vrot.slane %v331, 6
  %v340 = vrot.slane %v332, 6
  %v341 = vrot.slane %v333, 6
  %v342 = vrot.slane %v334, 6
  %347 = vst [vmem:[#allocation2 + $0x40] sm:$0x1c] %v339
  %348 = vst [vmem:[#allocation2 + $0x48] sm:$0x1c] %v340
  %349 = vst [vmem:[#allocation2 + $0x50] sm:$0x1c] %v341
  %350 = vst [vmem:[#allocation2 + $0x58] sm:$0x1c] %v342
  %351 = vst [vmem:[#allocation1] ss:$2 sm:$0xff] %v33
  %s352 = scalar_lea.vmem [#allocation1], 16
  %353 = vst [vmem:[%s352] ss:$2 sm:$0xff] %v34
  %v354 = vld.sshfl [vmem:[#allocation1] sm:$0xff pattern:$0x75316420]
  %v355 = vld.sshfl [vmem:[#allocation1 + $0x8] sm:$0xff pattern:$0x75316420]
  %v356 = vld.sshfl [vmem:[#allocation1 + $0x10] sm:$0xff pattern:$0x75316420]
  %v357 = vld.sshfl [vmem:[#allocation1 + $0x18] sm:$0xff pattern:$0x75316420]
  %362 = vrot.lane.b32.xlu0 %v354, 112
  %v363 = vpop.permute.xlu0 %362
  %364 = vrot.lane.b32.xlu0 %v355, 112
  %v365 = vpop.permute.xlu0 %364
  %366 = vrot.lane.b32.xlu0 %v356, 112
  %v367 = vpop.permute.xlu0 %366
  %368 = vrot.lane.b32.xlu0 %v357, 112
  %v369 = vpop.permute.xlu0 %368
  %vm370 = vcmp.lt.s32.totalorder %v69, 112
  %v371 = vsel %vm370, %v367, %v369
  %v372 = vsel %vm370, %v365, %v367
  %v373 = vsel %vm370, %v363, %v365
  %v374 = vsel %vm370, %v369, %v363
  %v375 = vperm.slane %v38, 7
  %v376 = vperm.slane %v39, 7
  %v377 = vperm.slane %v40, 7
  %v378 = vperm.slane %v41, 7
  %v379 = vmul.f32 %v373, %v375
  %v380 = vmul.f32 %v372, %v376
  %v381 = vmul.f32 %v371, %v377
  %v382 = vmul.f32 %v374, %v378
  %v387 = vrot.slane %v379, 3
  %v388 = vrot.slane %v380, 3
  %v389 = vrot.slane %v381, 3
  %v390 = vrot.slane %v382, 3
  %395 = vst [vmem:[#allocation2 + $0x40] sm:$0xe0] %v387
  %396 = vst [vmem:[#allocation2 + $0x48] sm:$0xe0] %v388
  %397 = vst [vmem:[#allocation2 + $0x50] sm:$0xe0] %v389
  %398 = vst [vmem:[#allocation2 + $0x58] sm:$0xe0] %v390
  %399 = vst [vmem:[#allocation1] ss:$2 sm:$0xff] %v33
  %s400 = scalar_lea.vmem [#allocation1], 16
  %401 = vst [vmem:[%s400] ss:$2 sm:$0xff] %v34
  %v402 = vld.sshfl [vmem:[#allocation1] sm:$0xff pattern:$0x75316420]
  %v403 = vld.sshfl [vmem:[#allocation1 + $0x8] sm:$0xff pattern:$0x75316420]
  %v404 = vld.sshfl [vmem:[#allocation1 + $0x10] sm:$0xff pattern:$0x75316420]
  %v405 = vld.sshfl [vmem:[#allocation1 + $0x18] sm:$0xff pattern:$0x75316420]
  %410 = vrot.lane.b32.xlu0 %v402, 111
  %v411 = vpop.permute.xlu0 %410
  %412 = vrot.lane.b32.xlu0 %v403, 111
  %v413 = vpop.permute.xlu0 %412
  %414 = vrot.lane.b32.xlu0 %v404, 111
  %v415 = vpop.permute.xlu0 %414
  %416 = vrot.lane.b32.xlu0 %v405, 111
  %v417 = vpop.permute.xlu0 %416
  %vm418 = vcmp.lt.s32.totalorder %v69, 111
  %v419 = vsel %vm418, %v415, %v417
  %v420 = vsel %vm418, %v413, %v415
  %v421 = vsel %vm418, %v411, %v413
  %v422 = vsel %vm418, %v417, %v411
  %v423 = vperm.slane %v42, 0
  %v424 = vperm.slane %v43, 0
  %v425 = vperm.slane %v44, 0
  %v426 = vperm.slane %v45, 0
  %v427 = vmul.f32 %v421, %v423
  %v428 = vmul.f32 %v420, %v424
  %v429 = vmul.f32 %v419, %v425
  %v430 = vmul.f32 %v422, %v426
  %431 = vst [vmem:[#allocation2 + $0x60] sm:$0x7] %v427
  %432 = vst [vmem:[#allocation2 + $0x68] sm:$0x7] %v428
  %433 = vst [vmem:[#allocation2 + $0x70] sm:$0x7] %v429
  %434 = vst [vmem:[#allocation2 + $0x78] sm:$0x7] %v430
  %v435 = vld [vmem:[#allocation2] sm:$0xff]
  %v436 = vld [vmem:[#allocation2 + $0x8] sm:$0xff]
  %v437 = vld [vmem:[#allocation2 + $0x10] sm:$0xff]
  %v438 = vld [vmem:[#allocation2 + $0x18] sm:$0xff]
  %v439 = vld [vmem:[#allocation2 + $0x20] sm:$0xff]
  %v440 = vld [vmem:[#allocation2 + $0x28] sm:$0xff]
  %v441 = vld [vmem:[#allocation2 + $0x30] sm:$0xff]
  %v442 = vld [vmem:[#allocation2 + $0x38] sm:$0xff]
  %v443 = vld [vmem:[#allocation2 + $0x40] sm:$0xff]
  %v444 = vld [vmem:[#allocation2 + $0x48] sm:$0xff]
  %v445 = vld [vmem:[#allocation2 + $0x50] sm:$0xff]
  %v446 = vld [vmem:[#allocation2 + $0x58] sm:$0xff]
  %v447 = vld [vmem:[#allocation2 + $0x60] sm:$0x7]
  %v448 = vld [vmem:[#allocation2 + $0x68] sm:$0x7]
  %v449 = vld [vmem:[#allocation2 + $0x70] sm:$0x7]
  %v450 = vld [vmem:[#allocation2 + $0x78] sm:$0x7]
  %v451 = vpack.c.bf16 %v439, %v435
  %v452 = vpack.c.bf16 %v440, %v436
  %v453 = vpack.c.bf16 %v441, %v437
  %v454 = vpack.c.bf16 %v442, %v438
  %v455 = vpack.c.bf16 %v447, %v443
  %v456 = vpack.c.bf16 %v448, %v444
  %v457 = vpack.c.bf16 %v449, %v445
  %v458 = vpack.c.bf16 %v450, %v446
  %460 = vset.pattern.permute.xlu0 0
  %461 = vperm.xlu0 %460, %v35
  %v462 = vpop.permute.xlu0 %461
  %vm464 = vcmask 220160
  %v466 = vsel %vm464, %v46, 0
  %vm468 = vcmask 1044480
  %vm469 = vcmask 1045504
  %v470 = vsel %vm468, 4294967295, 65535
  %v471 = vsel %vm469, %v470, 0
  %v473 = vand.u32 %v455, %v471
  %v476 = vand.u32 %v456, %v471
  %v479 = vand.u32 %v457, %v471
  %v482 = vand.u32 %v458, %v471
  %484 = vmatpush.bf16.msra.mxu0 0
  %485 = vmatpush.bf16.msra.mxu0 0
  %486 = vmatpush.bf16.msra.mxu0 0
  %487 = vmatpush.bf16.msra.mxu0 0
  %488 = vmatpush.bf16.msra.mxu0 0
  %489 = vmatpush.bf16.msra.mxu0 0
  %490 = vmatpush.bf16.msra.mxu0 %v473
  %491 = vmatpush.bf16.msra.mxu0 %v451
  %492 = vmatmul.bf16.gmra.mxu0 %v466
  %v493 = vpop.f32.mrf.mxu0
  %v494 = vadd.f32 %v462, %v493
  %v495 = vpop.f32.mrf.mxu0
  %496 = vdwg.mxu0
  %497 = vmatpush.bf16.msra.mxu0 0
  %498 = vmatpush.bf16.msra.mxu0 0
  %499 = vmatpush.bf16.msra.mxu0 0
  %500 = vmatpush.bf16.msra.mxu0 0
  %501 = vmatpush.bf16.msra.mxu0 0
  %502 = vmatpush.bf16.msra.mxu0 0
  %503 = vmatpush.bf16.msra.mxu0 %v476
  %504 = vmatpush.bf16.msra.mxu0 %v452
  %505 = vmatmul.bf16.gmra.mxu0 %v466
  %v506 = vpop.f32.mrf.mxu0
  %v507 = vadd.f32 %v462, %v506
  %v508 = vpop.f32.mrf.mxu0
  %509 = vdwg.mxu0
  %510 = vmatpush.bf16.msra.mxu0 0
  %511 = vmatpush.bf16.msra.mxu0 0
  %512 = vmatpush.bf16.msra.mxu0 0
  %513 = vmatpush.bf16.msra.mxu0 0
  %514 = vmatpush.bf16.msra.mxu0 0
  %515 = vmatpush.bf16.msra.mxu0 0
  %516 = vmatpush.bf16.msra.mxu0 %v479
  %517 = vmatpush.bf16.msra.mxu0 %v453
  %518 = vmatmul.bf16.gmra.mxu0 %v466
  %v519 = vpop.f32.mrf.mxu0
  %v520 = vadd.f32 %v462, %v519
  %v521 = vpop.f32.mrf.mxu0
  %522 = vdwg.mxu0
  %523 = vmatpush.bf16.msra.mxu0 0
  %524 = vmatpush.bf16.msra.mxu0 0
  %525 = vmatpush.bf16.msra.mxu0 0
  %526 = vmatpush.bf16.msra.mxu0 0
  %527 = vmatpush.bf16.msra.mxu0 0
  %528 = vmatpush.bf16.msra.mxu0 0
  %529 = vmatpush.bf16.msra.mxu0 %v482
  %530 = vmatpush.bf16.msra.mxu0 %v454
  %531 = vmatmul.bf16.gmra.mxu0 %v466
  %v532 = vpop.f32.mrf.mxu0
  %v533 = vadd.f32 %v462, %v532
  %v534 = vpop.f32.mrf.mxu0
  %535 = vdwg.mxu0
  %536 = vrot.lane.b32.xlu0 %v494, 127
  %v537 = vpop.permute.xlu0 %536
  %538 = vrot.lane.b32.xlu0 %v507, 127
  %v539 = vpop.permute.xlu0 %538
  %540 = vrot.lane.b32.xlu0 %v520, 127
  %v541 = vpop.permute.xlu0 %540
  %542 = vrot.lane.b32.xlu0 %v533, 127
  %v543 = vpop.permute.xlu0 %542
  %v544 = vsel %vm270, %v541, %v543
  %v545 = vsel %vm270, %v539, %v541
  %v546 = vsel %vm270, %v537, %v539
  %v547 = vsel %vm270, %v543, %v537
  %v548 = vmax.f32 %v494, %v546
  %v549 = vmax.f32 %v507, %v545
  %v550 = vmax.f32 %v520, %v544
  %v551 = vmax.f32 %v533, %v547
  %552 = vrot.lane.b32.xlu0 %v494, 112
  %v553 = vpop.permute.xlu0 %552
  %554 = vrot.lane.b32.xlu0 %v507, 112
  %v555 = vpop.permute.xlu0 %554
  %556 = vrot.lane.b32.xlu0 %v520, 112
  %v557 = vpop.permute.xlu0 %556
  %558 = vrot.lane.b32.xlu0 %v533, 112
  %v559 = vpop.permute.xlu0 %558
  %v560 = vsel %vm370, %v557, %v559
  %v561 = vsel %vm370, %v555, %v557
  %v562 = vsel %vm370, %v553, %v555
  %v563 = vsel %vm370, %v559, %v553
  %564 = vrot.lane.b32.xlu0 %v494, 111
  %v565 = vpop.permute.xlu0 %564
  %566 = vrot.lane.b32.xlu0 %v507, 111
  %v567 = vpop.permute.xlu0 %566
  %568 = vrot.lane.b32.xlu0 %v520, 111
  %v569 = vpop.permute.xlu0 %568
  %570 = vrot.lane.b32.xlu0 %v533, 111
  %v571 = vpop.permute.xlu0 %570
  %v572 = vsel %vm418, %v569, %v571
  %v573 = vsel %vm418, %v567, %v569
  %v574 = vsel %vm418, %v565, %v567
  %v575 = vsel %vm418, %v571, %v565
  %v576 = vmax.f32 %v562, %v574
  %v577 = vmax.f32 %v561, %v573
  %v578 = vmax.f32 %v560, %v572
  %v579 = vmax.f32 %v563, %v575
  %v580 = vmax.f32 %v548, %v576
  %v581 = vmax.f32 %v549, %v577
  %v582 = vmax.f32 %v550, %v578
  %v583 = vmax.f32 %v551, %v579
  %v584 = vld [vmem:[%s6] sm:$0xff]
  %v585 = vld [vmem:[%s6 + $0x8] sm:$0xff]
  %v586 = vld [vmem:[%s6 + $0x10] sm:$0xff]
  %v587 = vld [vmem:[%s6 + $0x18] sm:$0xff]
  %v588 = vld [vmem:[%s6 + $0x20] sm:$0xff]
  %v589 = vld [vmem:[%s6 + $0x28] sm:$0xff]
  %v590 = vld [vmem:[%s6 + $0x30] sm:$0xff]
  %v591 = vld [vmem:[%s6 + $0x38] sm:$0xff]
  %v592 = vld [vmem:[%s6 + $0x40] sm:$0xff]
  %v593 = vld [vmem:[%s6 + $0x48] sm:$0xff]
  %v594 = vld [vmem:[%s6 + $0x50] sm:$0xff]
  %v595 = vld [vmem:[%s6 + $0x58] sm:$0xff]
  %v596 = vld [vmem:[%s6 + $0x60] sm:$0xff]
  %v597 = vld [vmem:[%s6 + $0x68] sm:$0xff]
  %v598 = vld [vmem:[%s6 + $0x70] sm:$0xff]
  %v599 = vld [vmem:[%s6 + $0x78] sm:$0xff]
  %v600 = vld [vmem:[%s6 + $0x80] sm:$0xff]
  %v601 = vld [vmem:[%s6 + $0x88] sm:$0xff]
  %v602 = vld [vmem:[%s6 + $0x90] sm:$0xff]
  %v603 = vld [vmem:[%s6 + $0x98] sm:$0xff]
  %v604 = vld [vmem:[%s6 + $0xa0] sm:$0xff]
  %v605 = vld [vmem:[%s6 + $0xa8] sm:$0xff]
  %v606 = vld [vmem:[%s6 + $0xb0] sm:$0xff]
  %v607 = vld [vmem:[%s6 + $0xb8] sm:$0xff]
  %v608 = vld [vmem:[%s6 + $0xc0] sm:$0xff]
  %v609 = vld [vmem:[%s6 + $0xc8] sm:$0xff]
  %v610 = vld [vmem:[%s6 + $0xd0] sm:$0xff]
  %v611 = vld [vmem:[%s6 + $0xd8] sm:$0xff]
  %v612 = vld [vmem:[%s6 + $0xe0] sm:$0xff]
  %v613 = vld [vmem:[%s6 + $0xe8] sm:$0xff]
  %v614 = vld [vmem:[%s6 + $0xf0] sm:$0xff]
  %v615 = vld [vmem:[%s6 + $0xf8] sm:$0xff]
  %v616 = vld [vmem:[%s6 + $0x100] sm:$0xff]
  %v617 = vld [vmem:[%s6 + $0x108] sm:$0xff]
  %v618 = vld [vmem:[%s6 + $0x110] sm:$0xff]
  %v619 = vld [vmem:[%s6 + $0x118] sm:$0xff]
  %v620 = vld [vmem:[%s6 + $0x120] sm:$0xff]
  %v621 = vld [vmem:[%s6 + $0x128] sm:$0xff]
  %v622 = vld [vmem:[%s6 + $0x130] sm:$0xff]
  %v623 = vld [vmem:[%s6 + $0x138] sm:$0xff]
  %v624 = vld [vmem:[%s6 + $0x140] sm:$0xff]
  %v625 = vld [vmem:[%s6 + $0x148] sm:$0xff]
  %v626 = vld [vmem:[%s6 + $0x150] sm:$0xff]
  %v627 = vld [vmem:[%s6 + $0x158] sm:$0xff]
  %v628 = vld [vmem:[%s6 + $0x160] sm:$0xff]
  %v629 = vld [vmem:[%s6 + $0x168] sm:$0xff]
  %v630 = vld [vmem:[%s6 + $0x170] sm:$0xff]
  %v631 = vld [vmem:[%s6 + $0x178] sm:$0xff]
  %v632 = vld [vmem:[%s6 + $0x180] sm:$0xff]
  %v633 = vld [vmem:[%s6 + $0x188] sm:$0xff]
  %v634 = vld [vmem:[%s6 + $0x190] sm:$0xff]
  %v635 = vld [vmem:[%s6 + $0x198] sm:$0xff]
  %v636 = vld [vmem:[%s6 + $0x1a0] sm:$0xff]
  %v637 = vld [vmem:[%s6 + $0x1a8] sm:$0xff]
  %v638 = vld [vmem:[%s6 + $0x1b0] sm:$0xff]
  %v639 = vld [vmem:[%s6 + $0x1b8] sm:$0xff]
  %v640 = vld [vmem:[%s6 + $0x1c0] sm:$0xff]
  %v641 = vld [vmem:[%s6 + $0x1c8] sm:$0xff]
  %v642 = vld [vmem:[%s6 + $0x1d0] sm:$0xff]
  %v643 = vld [vmem:[%s6 + $0x1d8] sm:$0xff]
  %v644 = vld [vmem:[%s6 + $0x1e0] sm:$0xff]
  %v645 = vld [vmem:[%s6 + $0x1e8] sm:$0xff]
  %v646 = vld [vmem:[%s6 + $0x1f0] sm:$0xff]
  %v647 = vld [vmem:[%s6 + $0x1f8] sm:$0xff]
  %648 = vmatpush.msra.mxu0 %v599
  %649 = vmatpush.msra.mxu0 %v598
  %650 = vmatpush.msra.mxu0 %v597
  %651 = vmatpush.msra.mxu0 %v596
  %652 = vmatpush.msra.mxu0 %v595
  %653 = vmatpush.msra.mxu0 %v594
  %654 = vmatpush.msra.mxu0 %v593
  %655 = vmatpush.msra.mxu0 %v592
  %656 = vmatpush.msra.mxu0 %v591
  %657 = vmatpush.msra.mxu0 %v590
  %658 = vmatpush.msra.mxu0 %v589
  %659 = vmatpush.msra.mxu0 %v588
  %660 = vmatpush.msra.mxu0 %v587
  %661 = vmatpush.msra.mxu0 %v586
  %662 = vmatpush.msra.mxu0 %v585
  %663 = vmatpush.msra.mxu0 %v584
  %664 = vmatmul.f32.gmra.mxu0 %v580
  %v665 = vpop.f32.mrf.mxu0
  %v666 = vadd.f32 0.0, %v665
  %667 = vdwg.mxu0
  %668 = vmatpush.msra.mxu0 %v615
  %669 = vmatpush.msra.mxu0 %v614
  %670 = vmatpush.msra.mxu0 %v613
  %671 = vmatpush.msra.mxu0 %v612
  %672 = vmatpush.msra.mxu0 %v611
  %673 = vmatpush.msra.mxu0 %v610
  %674 = vmatpush.msra.mxu0 %v609
  %675 = vmatpush.msra.mxu0 %v608
  %676 = vmatpush.msra.mxu0 %v607
  %677 = vmatpush.msra.mxu0 %v606
  %678 = vmatpush.msra.mxu0 %v605
  %679 = vmatpush.msra.mxu0 %v604
  %680 = vmatpush.msra.mxu0 %v603
  %681 = vmatpush.msra.mxu0 %v602
  %682 = vmatpush.msra.mxu0 %v601
  %683 = vmatpush.msra.mxu0 %v600
  %684 = vmatmul.f32.gmra.mxu0 %v581
  %v685 = vpop.f32.mrf.mxu0
  %v686 = vadd.f32 %v666, %v685
  %687 = vdwg.mxu0
  %688 = vmatpush.msra.mxu0 %v631
  %689 = vmatpush.msra.mxu0 %v630
  %690 = vmatpush.msra.mxu0 %v629
  %691 = vmatpush.msra.mxu0 %v628
  %692 = vmatpush.msra.mxu0 %v627
  %693 = vmatpush.msra.mxu0 %v626
  %694 = vmatpush.msra.mxu0 %v625
  %695 = vmatpush.msra.mxu0 %v624
  %696 = vmatpush.msra.mxu0 %v623
  %697 = vmatpush.msra.mxu0 %v622
  %698 = vmatpush.msra.mxu0 %v621
  %699 = vmatpush.msra.mxu0 %v620
  %700 = vmatpush.msra.mxu0 %v619
  %701 = vmatpush.msra.mxu0 %v618
  %702 = vmatpush.msra.mxu0 %v617
  %703 = vmatpush.msra.mxu0 %v616
  %704 = vmatmul.f32.gmra.mxu0 %v582
  %v705 = vpop.f32.mrf.mxu0
  %v706 = vadd.f32 %v686, %v705
  %707 = vdwg.mxu0
  %708 = vmatpush.msra.mxu0 %v647
  %709 = vmatpush.msra.mxu0 %v646
  %710 = vmatpush.msra.mxu0 %v645
  %711 = vmatpush.msra.mxu0 %v644
  %712 = vmatpush.msra.mxu0 %v643
  %713 = vmatpush.msra.mxu0 %v642
  %714 = vmatpush.msra.mxu0 %v641
  %715 = vmatpush.msra.mxu0 %v640
  %716 = vmatpush.msra.mxu0 %v639
  %717 = vmatpush.msra.mxu0 %v638
  %718 = vmatpush.msra.mxu0 %v637
  %719 = vmatpush.msra.mxu0 %v636
  %720 = vmatpush.msra.mxu0 %v635
  %721 = vmatpush.msra.mxu0 %v634
  %722 = vmatpush.msra.mxu0 %v633
  %723 = vmatpush.msra.mxu0 %v632
  %724 = vmatmul.f32.gmra.mxu0 %v583
  %v725 = vpop.f32.mrf.mxu0
  %v726 = vadd.f32 %v706, %v725
  %727 = vdwg.mxu0
  %v728 = vld [vmem:[%s8 + $0x20] sm:$0xfe]
  %v729 = vld [vmem:[%s8 + $0x40] sm:$0x3]
  %v730 = vld [vmem:[%s2] sm:$0xf]
  %731 = vrot.lane.b32.xlu0 %v726, 9
  %v732 = vpop.permute.xlu0 %731
  %v733 = vperm.slane %v728, 1
  %v734 = vmul.f32 %v732, %v733
  %735 = vst [vmem:[#allocation2] sm:$0xf] %v734
  %736 = vrot.lane.b32.xlu0 %v726, 8
  %v737 = vpop.permute.xlu0 %736
  %v738 = vperm.slane %v728, 2
  %v739 = vmul.f32 %v737, %v738
  %v741 = vrot.slane %v739, 4
  %743 = vst [vmem:[#allocation2] sm:$0xf0] %v741
  %744 = vrot.lane.b32.xlu0 %v726, 7
  %v745 = vpop.permute.xlu0 %744
  %v746 = vperm.slane %v728, 3
  %v747 = vmul.f32 %v745, %v746
  %748 = vst [vmem:[#allocation2 + $0x20] sm:$0xf] %v747
  %749 = vrot.lane.b32.xlu0 %v726, 1
  %v750 = vpop.permute.xlu0 %749
  %v751 = vperm.slane %v728, 4
  %v752 = vmul.f32 %v750, %v751
  %v754 = vrot.slane %v752, 4
  %756 = vst [vmem:[#allocation2 + $0x20] sm:$0xf0] %v754
  %757 = vst [vmem:[#allocation2 + $0x40] sm:$0xf] %v726
  %758 = vrot.lane.b32.xlu0 %v726, 127
  %v759 = vpop.permute.xlu0 %758
  %v760 = vperm.slane %v728, 6
  %v761 = vmul.f32 %v759, %v760
  %v763 = vrot.slane %v761, 4
  %765 = vst [vmem:[#allocation2 + $0x40] sm:$0xf0] %v763
  %766 = vrot.lane.b32.xlu0 %v726, 121
  %v767 = vpop.permute.xlu0 %766
  %v768 = vperm.slane %v728, 7
  %v769 = vmul.f32 %v767, %v768
  %770 = vst [vmem:[#allocation2 + $0x60] sm:$0xf] %v769
  %771 = vrot.lane.b32.xlu0 %v726, 120
  %v772 = vpop.permute.xlu0 %771
  %v773 = vperm.slane %v729, 0
  %v774 = vmul.f32 %v772, %v773
  %v776 = vrot.slane %v774, 4
  %778 = vst [vmem:[#allocation2 + $0x60] sm:$0xf0] %v776
  %779 = vrot.lane.b32.xlu0 %v726, 119
  %v780 = vpop.permute.xlu0 %779
  %v781 = vperm.slane %v729, 1
  %v782 = vmul.f32 %v780, %v781
  %783 = vst [vmem:[#allocation2 + $0x80] sm:$0xf] %v782
  %v784 = vld [vmem:[#allocation2] sm:$0xff]
  %v785 = vld [vmem:[#allocation2 + $0x20] sm:$0xff]
  %v786 = vld [vmem:[#allocation2 + $0x40] sm:$0xff]
  %v787 = vld [vmem:[#allocation2 + $0x60] sm:$0xff]
  %v788 = vld [vmem:[#allocation2 + $0x80] sm:$0xf]
  %v789 = vpack.c.bf16 %v785, %v784
  %v790 = vpack.c.bf16 %v787, %v786
  %v791 = vpack.c.bf16 %v788, %v788
  %793 = vset.pattern.permute.xlu0 0
  %794 = vperm.xlu0 %793, %v36
  %v795 = vpop.permute.xlu0 %794
  %vm796 = vcmask 1043456
  %v797 = vrot.slane %v462, 4
  %v798 = vrot.slane %v795, 4
  %v799 = vsel %vm796, %v797, %v798
  %vm801 = vcmask 293888
  %v803 = vsel %vm801, %v730, 0
  %vm805 = vcmask 1041408
  %v807 = vsel %vm805, %v791, 0
  %809 = vmatpush.bf16.msra.mxu0 0
  %810 = vmatpush.bf16.msra.mxu0 0
  %811 = vmatpush.bf16.msra.mxu0 0
  %812 = vmatpush.bf16.msra.mxu0 0
  %813 = vmatpush.bf16.msra.mxu0 0
  %814 = vmatpush.bf16.msra.mxu0 %v807
  %815 = vmatpush.bf16.msra.mxu0 %v790
  %816 = vmatpush.bf16.msra.mxu0 %v789
  %817 = vmatmul.bf16.gmra.mxu0 %v803
  %v818 = vpop.f32.mrf.mxu0
  %v819 = vadd.f32 %v799, %v818
  %v820 = vpop.f32.mrf.mxu0
  %821 = vdwg.mxu0
  %v822 = vld [vmem:[%s7] sm:$0xff]
  %v823 = vld [vmem:[%s7 + $0x8] sm:$0xff]
  %v824 = vld [vmem:[%s7 + $0x10] sm:$0xff]
  %v825 = vld [vmem:[%s7 + $0x18] sm:$0xff]
  %v826 = vld [vmem:[%s7 + $0x20] sm:$0xff]
  %v827 = vld [vmem:[%s7 + $0x28] sm:$0xff]
  %v828 = vld [vmem:[%s7 + $0x30] sm:$0xff]
  %v829 = vld [vmem:[%s7 + $0x38] sm:$0xff]
  %v830 = vld [vmem:[%s7 + $0x40] sm:$0xff]
  %v831 = vld [vmem:[%s7 + $0x48] sm:$0xff]
  %v832 = vld [vmem:[%s7 + $0x50] sm:$0xff]
  %v833 = vld [vmem:[%s7 + $0x58] sm:$0xff]
  %v834 = vld [vmem:[%s7 + $0x60] sm:$0xff]
  %v835 = vld [vmem:[%s7 + $0x68] sm:$0xff]
  %v836 = vld [vmem:[%s7 + $0x70] sm:$0xff]
  %v837 = vld [vmem:[%s7 + $0x78] sm:$0xff]
  %v838 = vld [vmem:[%s7 + $0x80] sm:$0xff]
  %v839 = vld [vmem:[%s7 + $0x88] sm:$0xff]
  %v840 = vld [vmem:[%s7 + $0x90] sm:$0xff]
  %v841 = vld [vmem:[%s7 + $0x98] sm:$0xff]
  %v842 = vld [vmem:[%s7 + $0xa0] sm:$0xff]
  %v843 = vld [vmem:[%s7 + $0xa8] sm:$0xff]
  %v844 = vld [vmem:[%s7 + $0xb0] sm:$0xff]
  %v845 = vld [vmem:[%s7 + $0xb8] sm:$0xff]
  %v846 = vld [vmem:[%s7 + $0xc0] sm:$0xff]
  %v847 = vld [vmem:[%s7 + $0xc8] sm:$0xff]
  %v848 = vld [vmem:[%s7 + $0xd0] sm:$0xff]
  %v849 = vld [vmem:[%s7 + $0xd8] sm:$0xff]
  %v850 = vld [vmem:[%s7 + $0xe0] sm:$0xff]
  %v851 = vld [vmem:[%s7 + $0xe8] sm:$0xff]
  %v852 = vld [vmem:[%s7 + $0xf0] sm:$0xff]
  %v853 = vld [vmem:[%s7 + $0xf8] sm:$0xff]
  %v854 = vld [vmem:[%s7 + $0x100] sm:$0xff]
  %v855 = vld [vmem:[%s7 + $0x108] sm:$0xff]
  %v856 = vld [vmem:[%s7 + $0x110] sm:$0xff]
  %v857 = vld [vmem:[%s7 + $0x118] sm:$0xff]
  %v858 = vld [vmem:[%s7 + $0x120] sm:$0xff]
  %v859 = vld [vmem:[%s7 + $0x128] sm:$0xff]
  %v860 = vld [vmem:[%s7 + $0x130] sm:$0xff]
  %v861 = vld [vmem:[%s7 + $0x138] sm:$0xff]
  %v862 = vld [vmem:[%s7 + $0x140] sm:$0xff]
  %v863 = vld [vmem:[%s7 + $0x148] sm:$0xff]
  %v864 = vld [vmem:[%s7 + $0x150] sm:$0xff]
  %v865 = vld [vmem:[%s7 + $0x158] sm:$0xff]
  %v866 = vld [vmem:[%s7 + $0x160] sm:$0xff]
  %v867 = vld [vmem:[%s7 + $0x168] sm:$0xff]
  %v868 = vld [vmem:[%s7 + $0x170] sm:$0xff]
  %v869 = vld [vmem:[%s7 + $0x178] sm:$0xff]
  %v870 = vld [vmem:[%s7 + $0x180] sm:$0xff]
  %v871 = vld [vmem:[%s7 + $0x188] sm:$0xff]
  %v872 = vld [vmem:[%s7 + $0x190] sm:$0xff]
  %v873 = vld [vmem:[%s7 + $0x198] sm:$0xff]
  %v874 = vld [vmem:[%s7 + $0x1a0] sm:$0xff]
  %v875 = vld [vmem:[%s7 + $0x1a8] sm:$0xff]
  %v876 = vld [vmem:[%s7 + $0x1b0] sm:$0xff]
  %v877 = vld [vmem:[%s7 + $0x1b8] sm:$0xff]
  %v878 = vld [vmem:[%s7 + $0x1c0] sm:$0xff]
  %v879 = vld [vmem:[%s7 + $0x1c8] sm:$0xff]
  %v880 = vld [vmem:[%s7 + $0x1d0] sm:$0xff]
  %v881 = vld [vmem:[%s7 + $0x1d8] sm:$0xff]
  %v882 = vld [vmem:[%s7 + $0x1e0] sm:$0xff]
  %v883 = vld [vmem:[%s7 + $0x1e8] sm:$0xff]
  %v884 = vld [vmem:[%s7 + $0x1f0] sm:$0xff]
  %v885 = vld [vmem:[%s7 + $0x1f8] sm:$0xff]
  %886 = vmatpush.msra.mxu0 %v882
  %887 = vmatpush.msra.mxu0 %v878
  %888 = vmatpush.msra.mxu0 %v874
  %889 = vmatpush.msra.mxu0 %v870
  %890 = vmatpush.msra.mxu0 %v866
  %891 = vmatpush.msra.mxu0 %v862
  %892 = vmatpush.msra.mxu0 %v858
  %893 = vmatpush.msra.mxu0 %v854
  %894 = vmatpush.msra.mxu0 %v850
  %895 = vmatpush.msra.mxu0 %v846
  %896 = vmatpush.msra.mxu0 %v842
  %897 = vmatpush.msra.mxu0 %v838
  %898 = vmatpush.msra.mxu0 %v834
  %899 = vmatpush.msra.mxu0 %v830
  %900 = vmatpush.msra.mxu0 %v826
  %901 = vmatpush.msra.mxu0 %v822
  %902 = vmatmul.f32.gmra.mxu0 %v819
  %v903 = vpop.f32.mrf.mxu0
  %v904 = vadd.f32 0.0, %v903
  %905 = vdwg.mxu0
  %906 = vmatpush.msra.mxu0 %v883
  %907 = vmatpush.msra.mxu0 %v879
  %908 = vmatpush.msra.mxu0 %v875
  %909 = vmatpush.msra.mxu0 %v871
  %910 = vmatpush.msra.mxu0 %v867
  %911 = vmatpush.msra.mxu0 %v863
  %912 = vmatpush.msra.mxu0 %v859
  %913 = vmatpush.msra.mxu0 %v855
  %914 = vmatpush.msra.mxu0 %v851
  %915 = vmatpush.msra.mxu0 %v847
  %916 = vmatpush.msra.mxu0 %v843
  %917 = vmatpush.msra.mxu0 %v839
  %918 = vmatpush.msra.mxu0 %v835
  %919 = vmatpush.msra.mxu0 %v831
  %920 = vmatpush.msra.mxu0 %v827
  %921 = vmatpush.msra.mxu0 %v823
  %922 = vmatmul.f32.gmra.mxu0 %v819
  %v923 = vpop.f32.mrf.mxu0
  %v924 = vadd.f32 0.0, %v923
  %925 = vdwg.mxu0
  %926 = vmatpush.msra.mxu0 %v884
  %927 = vmatpush.msra.mxu0 %v880
  %928 = vmatpush.msra.mxu0 %v876
  %929 = vmatpush.msra.mxu0 %v872
  %930 = vmatpush.msra.mxu0 %v868
  %931 = vmatpush.msra.mxu0 %v864
  %932 = vmatpush.msra.mxu0 %v860
  %933 = vmatpush.msra.mxu0 %v856
  %934 = vmatpush.msra.mxu0 %v852
  %935 = vmatpush.msra.mxu0 %v848
  %936 = vmatpush.msra.mxu0 %v844
  %937 = vmatpush.msra.mxu0 %v840
  %938 = vmatpush.msra.mxu0 %v836
  %939 = vmatpush.msra.mxu0 %v832
  %940 = vmatpush.msra.mxu0 %v828
  %941 = vmatpush.msra.mxu0 %v824
  %942 = vmatmul.f32.gmra.mxu0 %v819
  %v943 = vpop.f32.mrf.mxu0
  %v944 = vadd.f32 0.0, %v943
  %945 = vdwg.mxu0
  %946 = vmatpush.msra.mxu0 %v885
  %947 = vmatpush.msra.mxu0 %v881
  %948 = vmatpush.msra.mxu0 %v877
  %949 = vmatpush.msra.mxu0 %v873
  %950 = vmatpush.msra.mxu0 %v869
  %951 = vmatpush.msra.mxu0 %v865
  %952 = vmatpush.msra.mxu0 %v861
  %953 = vmatpush.msra.mxu0 %v857
  %954 = vmatpush.msra.mxu0 %v853
  %955 = vmatpush.msra.mxu0 %v849
  %956 = vmatpush.msra.mxu0 %v845
  %957 = vmatpush.msra.mxu0 %v841
  %958 = vmatpush.msra.mxu0 %v837
  %959 = vmatpush.msra.mxu0 %v833
  %960 = vmatpush.msra.mxu0 %v829
  %961 = vmatpush.msra.mxu0 %v825
  %962 = vmatmul.f32.gmra.mxu0 %v819
  %v963 = vpop.f32.mrf.mxu0
  %v964 = vadd.f32 0.0, %v963
  %965 = vdwg.mxu0
  %v966 = vld [vmem:[%s3] sm:$0x3]
  %967 = vrot.lane.b32.xlu0 %v904, 17
  %v968 = vpop.permute.xlu0 %967
  %969 = vrot.lane.b32.xlu0 %v924, 17
  %v970 = vpop.permute.xlu0 %969
  %971 = vrot.lane.b32.xlu0 %v944, 17
  %v972 = vpop.permute.xlu0 %971
  %973 = vrot.lane.b32.xlu0 %v964, 17
  %v974 = vpop.permute.xlu0 %973
  %v975 = vsel %vm70, %v972, %v974
  %v976 = vsel %vm70, %v970, %v972
  %v977 = vsel %vm70, %v968, %v970
  %v978 = vsel %vm70, %v974, %v968
  %v979 = vmul.f32 %v978, %v75
  %v980 = vmul.f32 %v977, %v76
  %v981 = vmul.f32 %v976, %v77
  %v982 = vmul.f32 %v975, %v78
  %983 = vst [vmem:[#allocation2] sm:$0xff] %v979
  %984 = vst [vmem:[#allocation2 + $0x8] sm:$0xff] %v980
  %985 = vst [vmem:[#allocation2 + $0x10] sm:$0xff] %v981
  %986 = vst [vmem:[#allocation2 + $0x18] sm:$0xff] %v982
  %987 = vrot.lane.b32.xlu0 %v904, 16
  %v988 = vpop.permute.xlu0 %987
  %989 = vrot.lane.b32.xlu0 %v924, 16
  %v990 = vpop.permute.xlu0 %989
  %991 = vrot.lane.b32.xlu0 %v944, 16
  %v992 = vpop.permute.xlu0 %991
  %993 = vrot.lane.b32.xlu0 %v964, 16
  %v994 = vpop.permute.xlu0 %993
  %v995 = vsel %vm106, %v992, %v994
  %v996 = vsel %vm106, %v990, %v992
  %v997 = vsel %vm106, %v988, %v990
  %v998 = vsel %vm106, %v994, %v988
  %v999 = vmul.f32 %v998, %v111
  %v1000 = vmul.f32 %v997, %v112
  %v1001 = vmul.f32 %v996, %v113
  %v1002 = vmul.f32 %v995, %v114
  %1003 = vst [vmem:[#allocation2 + $0x20] sm:$0xff] %v999
  %1004 = vst [vmem:[#allocation2 + $0x28] sm:$0xff] %v1000
  %1005 = vst [vmem:[#allocation2 + $0x30] sm:$0xff] %v1001
  %1006 = vst [vmem:[#allocation2 + $0x38] sm:$0xff] %v1002
  %1007 = vrot.lane.b32.xlu0 %v904, 15
  %v1008 = vpop.permute.xlu0 %1007
  %1009 = vrot.lane.b32.xlu0 %v924, 15
  %v1010 = vpop.permute.xlu0 %1009
  %1011 = vrot.lane.b32.xlu0 %v944, 15
  %v1012 = vpop.permute.xlu0 %1011
  %1013 = vrot.lane.b32.xlu0 %v964, 15
  %v1014 = vpop.permute.xlu0 %1013
  %v1015 = vsel %vm154, %v1012, %v1014
  %v1016 = vsel %vm154, %v1010, %v1012
  %v1017 = vsel %vm154, %v1008, %v1010
  %v1018 = vsel %vm154, %v1014, %v1008
  %v1019 = vmul.f32 %v1018, %v159
  %v1020 = vmul.f32 %v1017, %v160
  %v1021 = vmul.f32 %v1016, %v161
  %v1022 = vmul.f32 %v1015, %v162
  %1023 = vst [vmem:[#allocation2 + $0x40] sm:$0xff] %v1019
  %1024 = vst [vmem:[#allocation2 + $0x48] sm:$0xff] %v1020
  %1025 = vst [vmem:[#allocation2 + $0x50] sm:$0xff] %v1021
  %1026 = vst [vmem:[#allocation2 + $0x58] sm:$0xff] %v1022
  %1027 = vrot.lane.b32.xlu0 %v904, 1
  %v1028 = vpop.permute.xlu0 %1027
  %1029 = vrot.lane.b32.xlu0 %v924, 1
  %v1030 = vpop.permute.xlu0 %1029
  %1031 = vrot.lane.b32.xlu0 %v944, 1
  %v1032 = vpop.permute.xlu0 %1031
  %1033 = vrot.lane.b32.xlu0 %v964, 1
  %v1034 = vpop.permute.xlu0 %1033
  %v1035 = vsel %vm206, %v1032, %v1034
  %v1036 = vsel %vm206, %v1030, %v1032
  %v1037 = vsel %vm206, %v1028, %v1030
  %v1038 = vsel %vm206, %v1034, %v1028
  %v1039 = vmul.f32 %v1038, %v211
  %v1040 = vmul.f32 %v1037, %v212
  %v1041 = vmul.f32 %v1036, %v213
  %v1042 = vmul.f32 %v1035, %v214
  %1043 = vst [vmem:[#allocation2 + $0x60] sm:$0xff] %v1039
  %1044 = vst [vmem:[#allocation2 + $0x68] sm:$0xff] %v1040
  %1045 = vst [vmem:[#allocation2 + $0x70] sm:$0xff] %v1041
  %1046 = vst [vmem:[#allocation2 + $0x78] sm:$0xff] %v1042
  %1047 = vst [vmem:[#allocation2 + $0x80] sm:$0xff] %v904
  %1048 = vst [vmem:[#allocation2 + $0x88] sm:$0xff] %v924
  %1049 = vst [vmem:[#allocation2 + $0x90] sm:$0xff] %v944
  %1050 = vst [vmem:[#allocation2 + $0x98] sm:$0xff] %v964
  %1051 = vrot.lane.b32.xlu0 %v904, 127
  %v1052 = vpop.permute.xlu0 %1051
  %1053 = vrot.lane.b32.xlu0 %v924, 127
  %v1054 = vpop.permute.xlu0 %1053
  %1055 = vrot.lane.b32.xlu0 %v944, 127
  %v1056 = vpop.permute.xlu0 %1055
  %1057 = vrot.lane.b32.xlu0 %v964, 127
  %v1058 = vpop.permute.xlu0 %1057
  %v1059 = vsel %vm270, %v1056, %v1058
  %v1060 = vsel %vm270, %v1054, %v1056
  %v1061 = vsel %vm270, %v1052, %v1054
  %v1062 = vsel %vm270, %v1058, %v1052
  %v1063 = vmul.f32 %v1061, %v275
  %v1064 = vmul.f32 %v1060, %v276
  %v1065 = vmul.f32 %v1059, %v277
  %v1066 = vmul.f32 %v1062, %v278
  %1067 = vst [vmem:[#allocation2 + $0xa0] sm:$0xff] %v1063
  %1068 = vst [vmem:[#allocation2 + $0xa8] sm:$0xff] %v1064
  %1069 = vst [vmem:[#allocation2 + $0xb0] sm:$0xff] %v1065
  %1070 = vst [vmem:[#allocation2 + $0xb8] sm:$0xff] %v1066
  %1071 = vrot.lane.b32.xlu0 %v904, 113
  %v1072 = vpop.permute.xlu0 %1071
  %1073 = vrot.lane.b32.xlu0 %v924, 113
  %v1074 = vpop.permute.xlu0 %1073
  %1075 = vrot.lane.b32.xlu0 %v944, 113
  %v1076 = vpop.permute.xlu0 %1075
  %1077 = vrot.lane.b32.xlu0 %v964, 113
  %v1078 = vpop.permute.xlu0 %1077
  %v1079 = vsel %vm322, %v1076, %v1078
  %v1080 = vsel %vm322, %v1074, %v1076
  %v1081 = vsel %vm322, %v1072, %v1074
  %v1082 = vsel %vm322, %v1078, %v1072
  %v1083 = vmul.f32 %v1081, %v327
  %v1084 = vmul.f32 %v1080, %v328
  %v1085 = vmul.f32 %v1079, %v329
  %v1086 = vmul.f32 %v1082, %v330
  %1087 = vst [vmem:[#allocation2 + $0xc0] sm:$0xff] %v1083
  %1088 = vst [vmem:[#allocation2 + $0xc8] sm:$0xff] %v1084
  %1089 = vst [vmem:[#allocation2 + $0xd0] sm:$0xff] %v1085
  %1090 = vst [vmem:[#allocation2 + $0xd8] sm:$0xff] %v1086
  %1091 = vrot.lane.b32.xlu0 %v904, 112
  %v1092 = vpop.permute.xlu0 %1091
  %1093 = vrot.lane.b32.xlu0 %v924, 112
  %v1094 = vpop.permute.xlu0 %1093
  %1095 = vrot.lane.b32.xlu0 %v944, 112
  %v1096 = vpop.permute.xlu0 %1095
  %1097 = vrot.lane.b32.xlu0 %v964, 112
  %v1098 = vpop.permute.xlu0 %1097
  %v1099 = vsel %vm370, %v1096, %v1098
  %v1100 = vsel %vm370, %v1094, %v1096
  %v1101 = vsel %vm370, %v1092, %v1094
  %v1102 = vsel %vm370, %v1098, %v1092
  %v1103 = vmul.f32 %v1101, %v375
  %v1104 = vmul.f32 %v1100, %v376
  %v1105 = vmul.f32 %v1099, %v377
  %v1106 = vmul.f32 %v1102, %v378
  %1107 = vst [vmem:[#allocation2 + $0xe0] sm:$0xff] %v1103
  %1108 = vst [vmem:[#allocation2 + $0xe8] sm:$0xff] %v1104
  %1109 = vst [vmem:[#allocation2 + $0xf0] sm:$0xff] %v1105
  %1110 = vst [vmem:[#allocation2 + $0xf8] sm:$0xff] %v1106
  %1111 = vrot.lane.b32.xlu0 %v904, 111
  %v1112 = vpop.permute.xlu0 %1111
  %1113 = vrot.lane.b32.xlu0 %v924, 111
  %v1114 = vpop.permute.xlu0 %1113
  %1115 = vrot.lane.b32.xlu0 %v944, 111
  %v1116 = vpop.permute.xlu0 %1115
  %1117 = vrot.lane.b32.xlu0 %v964, 111
  %v1118 = vpop.permute.xlu0 %1117
  %v1119 = vsel %vm418, %v1116, %v1118
  %v1120 = vsel %vm418, %v1114, %v1116
  %v1121 = vsel %vm418, %v1112, %v1114
  %v1122 = vsel %vm418, %v1118, %v1112
  %v1123 = vmul.f32 %v1121, %v423
  %v1124 = vmul.f32 %v1120, %v424
  %v1125 = vmul.f32 %v1119, %v425
  %v1126 = vmul.f32 %v1122, %v426
  %1127 = vst [vmem:[#allocation2 + $0x100] sm:$0xff] %v1123
  %1128 = vst [vmem:[#allocation2 + $0x108] sm:$0xff] %v1124
  %1129 = vst [vmem:[#allocation2 + $0x110] sm:$0xff] %v1125
  %1130 = vst [vmem:[#allocation2 + $0x118] sm:$0xff] %v1126
  %v1131 = vld [vmem:[#allocation2] sm:$0xff]
  %v1132 = vld [vmem:[#allocation2 + $0x8] sm:$0xff]
  %v1133 = vld [vmem:[#allocation2 + $0x10] sm:$0xff]
  %v1134 = vld [vmem:[#allocation2 + $0x18] sm:$0xff]
  %v1135 = vld [vmem:[#allocation2 + $0x20] sm:$0xff]
  %v1136 = vld [vmem:[#allocation2 + $0x28] sm:$0xff]
  %v1137 = vld [vmem:[#allocation2 + $0x30] sm:$0xff]
  %v1138 = vld [vmem:[#allocation2 + $0x38] sm:$0xff]
  %v1139 = vld [vmem:[#allocation2 + $0x40] sm:$0xff]
  %v1140 = vld [vmem:[#allocation2 + $0x48] sm:$0xff]
  %v1141 = vld [vmem:[#allocation2 + $0x50] sm:$0xff]
  %v1142 = vld [vmem:[#allocation2 + $0x58] sm:$0xff]
  %v1143 = vld [vmem:[#allocation2 + $0x60] sm:$0xff]
  %v1144 = vld [vmem:[#allocation2 + $0x68] sm:$0xff]
  %v1145 = vld [vmem:[#allocation2 + $0x70] sm:$0xff]
  %v1146 = vld [vmem:[#allocation2 + $0x78] sm:$0xff]
  %v1147 = vld [vmem:[#allocation2 + $0x80] sm:$0xff]
  %v1148 = vld [vmem:[#allocation2 + $0x88] sm:$0xff]
  %v1149 = vld [vmem:[#allocation2 + $0x90] sm:$0xff]
  %v1150 = vld [vmem:[#allocation2 + $0x98] sm:$0xff]
  %v1151 = vld [vmem:[#allocation2 + $0xa0] sm:$0xff]
  %v1152 = vld [vmem:[#allocation2 + $0xa8] sm:$0xff]
  %v1153 = vld [vmem:[#allocation2 + $0xb0] sm:$0xff]
  %v1154 = vld [vmem:[#allocation2 + $0xb8] sm:$0xff]
  %v1155 = vld [vmem:[#allocation2 + $0xc0] sm:$0xff]
  %v1156 = vld [vmem:[#allocation2 + $0xc8] sm:$0xff]
  %v1157 = vld [vmem:[#allocation2 + $0xd0] sm:$0xff]
  %v1158 = vld [vmem:[#allocation2 + $0xd8] sm:$0xff]
  %v1159 = vld [vmem:[#allocation2 + $0xe0] sm:$0xff]
  %v1160 = vld [vmem:[#allocation2 + $0xe8] sm:$0xff]
  %v1161 = vld [vmem:[#allocation2 + $0xf0] sm:$0xff]
  %v1162 = vld [vmem:[#allocation2 + $0xf8] sm:$0xff]
  %v1163 = vld [vmem:[#allocation2 + $0x100] sm:$0xff]
  %v1164 = vld [vmem:[#allocation2 + $0x108] sm:$0xff]
  %v1165 = vld [vmem:[#allocation2 + $0x110] sm:$0xff]
  %v1166 = vld [vmem:[#allocation2 + $0x118] sm:$0xff]
  %v1167 = vpack.c.bf16 %v1135, %v1131
  %v1168 = vpack.c.bf16 %v1136, %v1132
  %v1169 = vpack.c.bf16 %v1137, %v1133
  %v1170 = vpack.c.bf16 %v1138, %v1134
  %v1171 = vpack.c.bf16 %v1143, %v1139
  %v1172 = vpack.c.bf16 %v1144, %v1140
  %v1173 = vpack.c.bf16 %v1145, %v1141
  %v1174 = vpack.c.bf16 %v1146, %v1142
  %v1175 = vpack.c.bf16 %v1151, %v1147
  %v1176 = vpack.c.bf16 %v1152, %v1148
  %v1177 = vpack.c.bf16 %v1153, %v1149
  %v1178 = vpack.c.bf16 %v1154, %v1150
  %v1179 = vpack.c.bf16 %v1159, %v1155
  %v1180 = vpack.c.bf16 %v1160, %v1156
  %v1181 = vpack.c.bf16 %v1161, %v1157
  %v1182 = vpack.c.bf16 %v1162, %v1158
  %v1183 = vpack.c.bf16 %v1163, %v1163
  %v1184 = vpack.c.bf16 %v1164, %v1164
  %v1185 = vpack.c.bf16 %v1165, %v1165
  %v1186 = vpack.c.bf16 %v1166, %v1166
  %vm1188 = vcmask 588800
  %v1190 = vsel %vm1188, %v966, 0
  %v1193 = vsel %vm796, %v1183, 0
  %v1196 = vsel %vm796, %v1184, 0
  %v1199 = vsel %vm796, %v1185, 0
  %v1202 = vsel %vm796, %v1186, 0
  %1204 = vmatpush.bf16.msra.mxu0 0
  %1205 = vmatpush.bf16.msra.mxu0 0
  %1206 = vmatpush.bf16.msra.mxu0 0
  %1207 = vmatpush.bf16.msra.mxu0 %v1193
  %1208 = vmatpush.bf16.msra.mxu0 %v1179
  %1209 = vmatpush.bf16.msra.mxu0 %v1175
  %1210 = vmatpush.bf16.msra.mxu0 %v1171
  %1211 = vmatpush.bf16.msra.mxu0 %v1167
  %1212 = vmatmul.bf16.gmra.mxu0 %v1190
  %v1213 = vpop.f32.mrf.mxu0
  %v1214 = vadd.f32 %v798, %v1213
  %v1215 = vpop.f32.mrf.mxu0
  %1216 = vdwg.mxu0
  %1217 = vmatpush.bf16.msra.mxu0 0
  %1218 = vmatpush.bf16.msra.mxu0 0
  %1219 = vmatpush.bf16.msra.mxu0 0
  %1220 = vmatpush.bf16.msra.mxu0 %v1196
  %1221 = vmatpush.bf16.msra.mxu0 %v1180
  %1222 = vmatpush.bf16.msra.mxu0 %v1176
  %1223 = vmatpush.bf16.msra.mxu0 %v1172
  %1224 = vmatpush.bf16.msra.mxu0 %v1168
  %1225 = vmatmul.bf16.gmra.mxu0 %v1190
  %v1226 = vpop.f32.mrf.mxu0
  %v1227 = vadd.f32 %v798, %v1226
  %v1228 = vpop.f32.mrf.mxu0
  %1229 = vdwg.mxu0
  %1230 = vmatpush.bf16.msra.mxu0 0
  %1231 = vmatpush.bf16.msra.mxu0 0
  %1232 = vmatpush.bf16.msra.mxu0 0
  %1233 = vmatpush.bf16.msra.mxu0 %v1199
  %1234 = vmatpush.bf16.msra.mxu0 %v1181
  %1235 = vmatpush.bf16.msra.mxu0 %v1177
  %1236 = vmatpush.bf16.msra.mxu0 %v1173
  %1237 = vmatpush.bf16.msra.mxu0 %v1169
  %1238 = vmatmul.bf16.gmra.mxu0 %v1190
  %v1239 = vpop.f32.mrf.mxu0
  %v1240 = vadd.f32 %v798, %v1239
  %v1241 = vpop.f32.mrf.mxu0
  %1242 = vdwg.mxu0
  %1243 = vmatpush.bf16.msra.mxu0 0
  %1244 = vmatpush.bf16.msra.mxu0 0
  %1245 = vmatpush.bf16.msra.mxu0 0
  %1246 = vmatpush.bf16.msra.mxu0 %v1202
  %1247 = vmatpush.bf16.msra.mxu0 %v1182
  %1248 = vmatpush.bf16.msra.mxu0 %v1178
  %1249 = vmatpush.bf16.msra.mxu0 %v1174
  %1250 = vmatpush.bf16.msra.mxu0 %v1170
  %1251 = vmatmul.bf16.gmra.mxu0 %v1190
  %v1252 = vpop.f32.mrf.mxu0
  %v1253 = vadd.f32 %v798, %v1252
  %v1254 = vpop.f32.mrf.mxu0
  %1255 = vdwg.mxu0
  %v1256 = vld [vmem:[%s4] sm:$0x3]
  %1257 = vrot.lane.b32.xlu0 %v1214, 17
  %v1258 = vpop.permute.xlu0 %1257
  %1259 = vrot.lane.b32.xlu0 %v1227, 17
  %v1260 = vpop.permute.xlu0 %1259
  %1261 = vrot.lane.b32.xlu0 %v1240, 17
  %v1262 = vpop.permute.xlu0 %1261
  %1263 = vrot.lane.b32.xlu0 %v1253, 17
  %v1264 = vpop.permute.xlu0 %1263
  %v1265 = vsel %vm70, %v1262, %v1264
  %v1266 = vsel %vm70, %v1260, %v1262
  %v1267 = vsel %vm70, %v1258, %v1260
  %v1268 = vsel %vm70, %v1264, %v1258
  %v1269 = vmul.f32 %v1268, %v75
  %v1270 = vmul.f32 %v1267, %v76
  %v1271 = vmul.f32 %v1266, %v77
  %v1272 = vmul.f32 %v1265, %v78
  %1273 = vst [vmem:[#allocation2] sm:$0xf] %v1269
  %1274 = vst [vmem:[#allocation2 + $0x8] sm:$0xf] %v1270
  %1275 = vst [vmem:[#allocation2 + $0x10] sm:$0xf] %v1271
  %1276 = vst [vmem:[#allocation2 + $0x18] sm:$0xf] %v1272
  %1277 = vrot.lane.b32.xlu0 %v1214, 16
  %v1278 = vpop.permute.xlu0 %1277
  %1279 = vrot.lane.b32.xlu0 %v1227, 16
  %v1280 = vpop.permute.xlu0 %1279
  %1281 = vrot.lane.b32.xlu0 %v1240, 16
  %v1282 = vpop.permute.xlu0 %1281
  %1283 = vrot.lane.b32.xlu0 %v1253, 16
  %v1284 = vpop.permute.xlu0 %1283
  %v1285 = vsel %vm106, %v1282, %v1284
  %v1286 = vsel %vm106, %v1280, %v1282
  %v1287 = vsel %vm106, %v1278, %v1280
  %v1288 = vsel %vm106, %v1284, %v1278
  %v1289 = vmul.f32 %v1288, %v111
  %v1290 = vmul.f32 %v1287, %v112
  %v1291 = vmul.f32 %v1286, %v113
  %v1292 = vmul.f32 %v1285, %v114
  %v1297 = vrot.slane %v1289, 4
  %v1298 = vrot.slane %v1290, 4
  %v1299 = vrot.slane %v1291, 4
  %v1300 = vrot.slane %v1292, 4
  %1305 = vst [vmem:[#allocation2] sm:$0xf0] %v1297
  %1306 = vst [vmem:[#allocation2 + $0x8] sm:$0xf0] %v1298
  %1307 = vst [vmem:[#allocation2 + $0x10] sm:$0xf0] %v1299
  %1308 = vst [vmem:[#allocation2 + $0x18] sm:$0xf0] %v1300
  %1309 = vrot.lane.b32.xlu0 %v1214, 15
  %v1310 = vpop.permute.xlu0 %1309
  %1311 = vrot.lane.b32.xlu0 %v1227, 15
  %v1312 = vpop.permute.xlu0 %1311
  %1313 = vrot.lane.b32.xlu0 %v1240, 15
  %v1314 = vpop.permute.xlu0 %1313
  %1315 = vrot.lane.b32.xlu0 %v1253, 15
  %v1316 = vpop.permute.xlu0 %1315
  %v1317 = vsel %vm154, %v1314, %v1316
  %v1318 = vsel %vm154, %v1312, %v1314
  %v1319 = vsel %vm154, %v1310, %v1312
  %v1320 = vsel %vm154, %v1316, %v1310
  %v1321 = vmul.f32 %v1320, %v159
  %v1322 = vmul.f32 %v1319, %v160
  %v1323 = vmul.f32 %v1318, %v161
  %v1324 = vmul.f32 %v1317, %v162
  %1325 = vst [vmem:[#allocation2 + $0x20] sm:$0xf] %v1321
  %1326 = vst [vmem:[#allocation2 + $0x28] sm:$0xf] %v1322
  %1327 = vst [vmem:[#allocation2 + $0x30] sm:$0xf] %v1323
  %1328 = vst [vmem:[#allocation2 + $0x38] sm:$0xf] %v1324
  %1329 = vrot.lane.b32.xlu0 %v1214, 1
  %v1330 = vpop.permute.xlu0 %1329
  %1331 = vrot.lane.b32.xlu0 %v1227, 1
  %v1332 = vpop.permute.xlu0 %1331
  %1333 = vrot.lane.b32.xlu0 %v1240, 1
  %v1334 = vpop.permute.xlu0 %1333
  %1335 = vrot.lane.b32.xlu0 %v1253, 1
  %v1336 = vpop.permute.xlu0 %1335
  %v1337 = vsel %vm206, %v1334, %v1336
  %v1338 = vsel %vm206, %v1332, %v1334
  %v1339 = vsel %vm206, %v1330, %v1332
  %v1340 = vsel %vm206, %v1336, %v1330
  %v1341 = vmul.f32 %v1340, %v211
  %v1342 = vmul.f32 %v1339, %v212
  %v1343 = vmul.f32 %v1338, %v213
  %v1344 = vmul.f32 %v1337, %v214
  %v1349 = vrot.slane %v1341, 4
  %v1350 = vrot.slane %v1342, 4
  %v1351 = vrot.slane %v1343, 4
  %v1352 = vrot.slane %v1344, 4
  %1357 = vst [vmem:[#allocation2 + $0x20] sm:$0xf0] %v1349
  %1358 = vst [vmem:[#allocation2 + $0x28] sm:$0xf0] %v1350
  %1359 = vst [vmem:[#allocation2 + $0x30] sm:$0xf0] %v1351
  %1360 = vst [vmem:[#allocation2 + $0x38] sm:$0xf0] %v1352
  %1361 = vst [vmem:[#allocation2 + $0x40] sm:$0xf] %v1214
  %1362 = vst [vmem:[#allocation2 + $0x48] sm:$0xf] %v1227
  %1363 = vst [vmem:[#allocation2 + $0x50] sm:$0xf] %v1240
  %1364 = vst [vmem:[#allocation2 + $0x58] sm:$0xf] %v1253
  %1365 = vrot.lane.b32.xlu0 %v1214, 127
  %v1366 = vpop.permute.xlu0 %1365
  %1367 = vrot.lane.b32.xlu0 %v1227, 127
  %v1368 = vpop.permute.xlu0 %1367
  %1369 = vrot.lane.b32.xlu0 %v1240, 127
  %v1370 = vpop.permute.xlu0 %1369
  %1371 = vrot.lane.b32.xlu0 %v1253, 127
  %v1372 = vpop.permute.xlu0 %1371
  %v1373 = vsel %vm270, %v1370, %v1372
  %v1374 = vsel %vm270, %v1368, %v1370
  %v1375 = vsel %vm270, %v1366, %v1368
  %v1376 = vsel %vm270, %v1372, %v1366
  %v1377 = vmul.f32 %v1375, %v275
  %v1378 = vmul.f32 %v1374, %v276
  %v1379 = vmul.f32 %v1373, %v277
  %v1380 = vmul.f32 %v1376, %v278
  %v1385 = vrot.slane %v1377, 4
  %v1386 = vrot.slane %v1378, 4
  %v1387 = vrot.slane %v1379, 4
  %v1388 = vrot.slane %v1380, 4
  %1393 = vst [vmem:[#allocation2 + $0x40] sm:$0xf0] %v1385
  %1394 = vst [vmem:[#allocation2 + $0x48] sm:$0xf0] %v1386
  %1395 = vst [vmem:[#allocation2 + $0x50] sm:$0xf0] %v1387
  %1396 = vst [vmem:[#allocation2 + $0x58] sm:$0xf0] %v1388
  %1397 = vrot.lane.b32.xlu0 %v1214, 113
  %v1398 = vpop.permute.xlu0 %1397
  %1399 = vrot.lane.b32.xlu0 %v1227, 113
  %v1400 = vpop.permute.xlu0 %1399
  %1401 = vrot.lane.b32.xlu0 %v1240, 113
  %v1402 = vpop.permute.xlu0 %1401
  %1403 = vrot.lane.b32.xlu0 %v1253, 113
  %v1404 = vpop.permute.xlu0 %1403
  %v1405 = vsel %vm322, %v1402, %v1404
  %v1406 = vsel %vm322, %v1400, %v1402
  %v1407 = vsel %vm322, %v1398, %v1400
  %v1408 = vsel %vm322, %v1404, %v1398
  %v1409 = vmul.f32 %v1407, %v327
  %v1410 = vmul.f32 %v1406, %v328
  %v1411 = vmul.f32 %v1405, %v329
  %v1412 = vmul.f32 %v1408, %v330
  %1413 = vst [vmem:[#allocation2 + $0x60] sm:$0xf] %v1409
  %1414 = vst [vmem:[#allocation2 + $0x68] sm:$0xf] %v1410
  %1415 = vst [vmem:[#allocation2 + $0x70] sm:$0xf] %v1411
  %1416 = vst [vmem:[#allocation2 + $0x78] sm:$0xf] %v1412
  %1417 = vrot.lane.b32.xlu0 %v1214, 112
  %v1418 = vpop.permute.xlu0 %1417
  %1419 = vrot.lane.b32.xlu0 %v1227, 112
  %v1420 = vpop.permute.xlu0 %1419
  %1421 = vrot.lane.b32.xlu0 %v1240, 112
  %v1422 = vpop.permute.xlu0 %1421
  %1423 = vrot.lane.b32.xlu0 %v1253, 112
  %v1424 = vpop.permute.xlu0 %1423
  %v1425 = vsel %vm370, %v1422, %v1424
  %v1426 = vsel %vm370, %v1420, %v1422
  %v1427 = vsel %vm370, %v1418, %v1420
  %v1428 = vsel %vm370, %v1424, %v1418
  %v1429 = vmul.f32 %v1427, %v375
  %v1430 = vmul.f32 %v1426, %v376
  %v1431 = vmul.f32 %v1425, %v377
  %v1432 = vmul.f32 %v1428, %v378
  %v1437 = vrot.slane %v1429, 4
  %v1438 = vrot.slane %v1430, 4
  %v1439 = vrot.slane %v1431, 4
  %v1440 = vrot.slane %v1432, 4
  %1445 = vst [vmem:[#allocation2 + $0x60] sm:$0xf0] %v1437
  %1446 = vst [vmem:[#allocation2 + $0x68] sm:$0xf0] %v1438
  %1447 = vst [vmem:[#allocation2 + $0x70] sm:$0xf0] %v1439
  %1448 = vst [vmem:[#allocation2 + $0x78] sm:$0xf0] %v1440
  %1449 = vrot.lane.b32.xlu0 %v1214, 111
  %v1450 = vpop.permute.xlu0 %1449
  %1451 = vrot.lane.b32.xlu0 %v1227, 111
  %v1452 = vpop.permute.xlu0 %1451
  %1453 = vrot.lane.b32.xlu0 %v1240, 111
  %v1454 = vpop.permute.xlu0 %1453
  %1455 = vrot.lane.b32.xlu0 %v1253, 111
  %v1456 = vpop.permute.xlu0 %1455
  %v1457 = vsel %vm418, %v1454, %v1456
  %v1458 = vsel %vm418, %v1452, %v1454
  %v1459 = vsel %vm418, %v1450, %v1452
  %v1460 = vsel %vm418, %v1456, %v1450
  %v1461 = vmul.f32 %v1459, %v423
  %v1462 = vmul.f32 %v1458, %v424
  %v1463 = vmul.f32 %v1457, %v425
  %v1464 = vmul.f32 %v1460, %v426
  %1465 = vst [vmem:[#allocation2 + $0x80] sm:$0xf] %v1461
  %1466 = vst [vmem:[#allocation2 + $0x88] sm:$0xf] %v1462
  %1467 = vst [vmem:[#allocation2 + $0x90] sm:$0xf] %v1463
  %1468 = vst [vmem:[#allocation2 + $0x98] sm:$0xf] %v1464
  %v1469 = vld [vmem:[#allocation2] sm:$0xff]
  %v1470 = vld [vmem:[#allocation2 + $0x8] sm:$0xff]
  %v1471 = vld [vmem:[#allocation2 + $0x10] sm:$0xff]
  %v1472 = vld [vmem:[#allocation2 + $0x18] sm:$0xff]
  %v1473 = vld [vmem:[#allocation2 + $0x20] sm:$0xff]
  %v1474 = vld [vmem:[#allocation2 + $0x28] sm:$0xff]
  %v1475 = vld [vmem:[#allocation2 + $0x30] sm:$0xff]
  %v1476 = vld [vmem:[#allocation2 + $0x38] sm:$0xff]
  %v1477 = vld [vmem:[#allocation2 + $0x40] sm:$0xff]
  %v1478 = vld [vmem:[#allocation2 + $0x48] sm:$0xff]
  %v1479 = vld [vmem:[#allocation2 + $0x50] sm:$0xff]
  %v1480 = vld [vmem:[#allocation2 + $0x58] sm:$0xff]
  %v1481 = vld [vmem:[#allocation2 + $0x60] sm:$0xff]
  %v1482 = vld [vmem:[#allocation2 + $0x68] sm:$0xff]
  %v1483 = vld [vmem:[#allocation2 + $0x70] sm:$0xff]
  %v1484 = vld [vmem:[#allocation2 + $0x78] sm:$0xff]
  %v1485 = vld [vmem:[#allocation2 + $0x80] sm:$0xf]
  %v1486 = vld [vmem:[#allocation2 + $0x88] sm:$0xf]
  %v1487 = vld [vmem:[#allocation2 + $0x90] sm:$0xf]
  %v1488 = vld [vmem:[#allocation2 + $0x98] sm:$0xf]
  %v1489 = vpack.c.bf16 %v1473, %v1469
  %v1490 = vpack.c.bf16 %v1474, %v1470
  %v1491 = vpack.c.bf16 %v1475, %v1471
  %v1492 = vpack.c.bf16 %v1476, %v1472
  %v1493 = vpack.c.bf16 %v1481, %v1477
  %v1494 = vpack.c.bf16 %v1482, %v1478
  %v1495 = vpack.c.bf16 %v1483, %v1479
  %v1496 = vpack.c.bf16 %v1484, %v1480
  %v1497 = vpack.c.bf16 %v1485, %v1485
  %v1498 = vpack.c.bf16 %v1486, %v1486
  %v1499 = vpack.c.bf16 %v1487, %v1487
  %v1500 = vpack.c.bf16 %v1488, %v1488
  %1502 = vset.pattern.permute.xlu0 0
  %1503 = vperm.xlu0 %1502, %v37
  %v1504 = vpop.permute.xlu0 %1503
  %v1507 = vsel %vm801, %v1256, 0
  %v1510 = vsel %vm805, %v1497, 0
  %v1513 = vsel %vm805, %v1498, 0
  %v1516 = vsel %vm805, %v1499, 0
  %v1519 = vsel %vm805, %v1500, 0
  %1521 = vmatpush.bf16.msra.mxu0 0
  %1522 = vmatpush.bf16.msra.mxu0 0
  %1523 = vmatpush.bf16.msra.mxu0 0
  %1524 = vmatpush.bf16.msra.mxu0 0
  %1525 = vmatpush.bf16.msra.mxu0 0
  %1526 = vmatpush.bf16.msra.mxu0 %v1510
  %1527 = vmatpush.bf16.msra.mxu0 %v1493
  %1528 = vmatpush.bf16.msra.mxu0 %v1489
  %1529 = vmatmul.bf16.gmra.mxu0 %v1507
  %v1530 = vpop.f32.mrf.mxu0
  %v1531 = vadd.f32 %v1504, %v1530
  %v1532 = vpop.f32.mrf.mxu0
  %1533 = vdwg.mxu0
  %1534 = vmatpush.bf16.msra.mxu0 0
  %1535 = vmatpush.bf16.msra.mxu0 0
  %1536 = vmatpush.bf16.msra.mxu0 0
  %1537 = vmatpush.bf16.msra.mxu0 0
  %1538 = vmatpush.bf16.msra.mxu0 0
  %1539 = vmatpush.bf16.msra.mxu0 %v1513
  %1540 = vmatpush.bf16.msra.mxu0 %v1494
  %1541 = vmatpush.bf16.msra.mxu0 %v1490
  %1542 = vmatmul.bf16.gmra.mxu0 %v1507
  %v1543 = vpop.f32.mrf.mxu0
  %v1544 = vadd.f32 %v1504, %v1543
  %v1545 = vpop.f32.mrf.mxu0
  %1546 = vdwg.mxu0
  %1547 = vmatpush.bf16.msra.mxu0 0
  %1548 = vmatpush.bf16.msra.mxu0 0
  %1549 = vmatpush.bf16.msra.mxu0 0
  %1550 = vmatpush.bf16.msra.mxu0 0
  %1551 = vmatpush.bf16.msra.mxu0 0
  %1552 = vmatpush.bf16.msra.mxu0 %v1516
  %1553 = vmatpush.bf16.msra.mxu0 %v1495
  %1554 = vmatpush.bf16.msra.mxu0 %v1491
  %1555 = vmatmul.bf16.gmra.mxu0 %v1507
  %v1556 = vpop.f32.mrf.mxu0
  %v1557 = vadd.f32 %v1504, %v1556
  %v1558 = vpop.f32.mrf.mxu0
  %1559 = vdwg.mxu0
  %1560 = vmatpush.bf16.msra.mxu0 0
  %1561 = vmatpush.bf16.msra.mxu0 0
  %1562 = vmatpush.bf16.msra.mxu0 0
  %1563 = vmatpush.bf16.msra.mxu0 0
  %1564 = vmatpush.bf16.msra.mxu0 0
  %1565 = vmatpush.bf16.msra.mxu0 %v1519
  %1566 = vmatpush.bf16.msra.mxu0 %v1496
  %1567 = vmatpush.bf16.msra.mxu0 %v1492
  %1568 = vmatmul.bf16.gmra.mxu0 %v1507
  %v1569 = vpop.f32.mrf.mxu0
  %v1570 = vadd.f32 %v1504, %v1569
  %v1571 = vpop.f32.mrf.mxu0
  %1572 = vdwg.mxu0
  %v1573 = vxor.u32 %v1531, 2147483648
  %v1574 = vxor.u32 %v1544, 2147483648
  %v1575 = vxor.u32 %v1557, 2147483648
  %v1576 = vxor.u32 %v1570, 2147483648
  %v1577 = vmul.f32 %v1573, 1.442695
  %v1578 = vpow.pop %v1577
  %v1579 = vmul.f32 %v1574, 1.442695
  %v1580 = vpow.pop %v1579
  %v1581 = vmul.f32 %v1575, 1.442695
  %v1582 = vpow.pop %v1581
  %v1583 = vmul.f32 %v1576, 1.442695
  %v1584 = vpow.pop %v1583
  %v1585 = vadd.f32 %v1578, 1.0
  %v1586 = vadd.f32 %v1580, 1.0
  %v1587 = vadd.f32 %v1582, 1.0
  %v1588 = vadd.f32 %v1584, 1.0
  %v1589 = vrcp.pop %v1585
  %v1590 = vmul.f32 %v1585, %v1589
  %v1591 = vsub.f32 1.0, %v1590
  %v1592 = vmul.f32 %v1589, %v1591
  %v1593 = vadd.f32 %v1589, %v1592
  %vm1594 = vweird.f32 %v1585
  %vm1595 = vweird.f32 %v1589
  %vm1596 = vmor %vm1594, %vm1595
  %v1597 = vsel %vm1596, %v1589, %v1593
  %v1598 = vand.u32 2147483647, %v1585
  %vm1599 = vcmp.eq.f32.partialorder %v1598, 8.507059e+37
  %v1600 = vand.u32 %v1585, 2147483648
  %v1601 = vor.u32 1.1754944e-38, %v1600
  %v1602 = vsel %vm1599, %v1601, %v1597
  %v1603 = vmul.f32 1.0, %v1602
  %v1604 = vrcp.pop %v1586
  %v1605 = vmul.f32 %v1586, %v1604
  %v1606 = vsub.f32 1.0, %v1605
  %v1607 = vmul.f32 %v1604, %v1606
  %v1608 = vadd.f32 %v1604, %v1607
  %vm1609 = vweird.f32 %v1586
  %vm1610 = vweird.f32 %v1604
  %vm1611 = vmor %vm1609, %vm1610
  %v1612 = vsel %vm1611, %v1604, %v1608
  %v1613 = vand.u32 2147483647, %v1586
  %vm1614 = vcmp.eq.f32.partialorder %v1613, 8.507059e+37
  %v1615 = vand.u32 %v1586, 2147483648
  %v1616 = vor.u32 1.1754944e-38, %v1615
  %v1617 = vsel %vm1614, %v1616, %v1612
  %v1618 = vmul.f32 1.0, %v1617
  %v1619 = vrcp.pop %v1587
  %v1620 = vmul.f32 %v1587, %v1619
  %v1621 = vsub.f32 1.0, %v1620
  %v1622 = vmul.f32 %v1619, %v1621
  %v1623 = vadd.f32 %v1619, %v1622
  %vm1624 = vweird.f32 %v1587
  %vm1625 = vweird.f32 %v1619
  %vm1626 = vmor %vm1624, %vm1625
  %v1627 = vsel %vm1626, %v1619, %v1623
  %v1628 = vand.u32 2147483647, %v1587
  %vm1629 = vcmp.eq.f32.partialorder %v1628, 8.507059e+37
  %v1630 = vand.u32 %v1587, 2147483648
  %v1631 = vor.u32 1.1754944e-38, %v1630
  %v1632 = vsel %vm1629, %v1631, %v1627
  %v1633 = vmul.f32 1.0, %v1632
  %v1634 = vrcp.pop %v1588
  %v1635 = vmul.f32 %v1588, %v1634
  %v1636 = vsub.f32 1.0, %v1635
  %v1637 = vmul.f32 %v1634, %v1636
  %v1638 = vadd.f32 %v1634, %v1637
  %vm1639 = vweird.f32 %v1588
  %vm1640 = vweird.f32 %v1634
  %vm1641 = vmor %vm1639, %vm1640
  %v1642 = vsel %vm1641, %v1634, %v1638
  %v1643 = vand.u32 2147483647, %v1588
  %vm1644 = vcmp.eq.f32.partialorder %v1643, 8.507059e+37
  %v1645 = vand.u32 %v1588, 2147483648
  %v1646 = vor.u32 1.1754944e-38, %v1645
  %v1647 = vsel %vm1644, %v1646, %v1642
  %v1648 = vmul.f32 1.0, %v1647
  %v1653 = vrot.slane %v1618, 4
  %v1654 = vrot.slane %v1648, 4
  %v1655 = vsel %vm796, %v1603, %v1653
  %v1656 = vsel %vm796, %v1633, %v1654
  %1659 = vst [vmem:[%s9] sm:$0x77] %v1655
  %1660 = vst [vmem:[%s9 + $0x8] sm:$0x77] %v1656
  // Predicated region
  $region38: #{_lambda_.1} parent=0 // pred_check
    _
  $region39: #{_lambda_.1} parent=0 // pred_check_branch
    %1662 = sbr.rel (0) target = $region41
  $region40: #{_lambda_.1} parent=0 // pred_region
    _
  $region41: #{_lambda_.1} parent=0 // pred_fallthru
    _
  // Predicated region
  $region42: #{_lambda_.1} parent=0 // pred_check
    _
  $region43: #{_lambda_.1} parent=0 // pred_check_branch
    %1664 = sbr.rel (0) target = $region45
  $region44: #{_lambda_.1} parent=0 // pred_region
    _
  $region45: #{_lambda_.1} parent=0 // pred_fallthru
    _

</llo_original>
